<compile_context>
chip_gen: v5e
topology: v5e:2x2
jax: 0.10.0
libtpu: 0.0.40
codegen_flags: <defaults>
</compile_context>

<pallas_src>
import functools

import numpy as np
import jax
import jax.numpy as jnp
from jax import lax
from jax.experimental import pallas as pl
from jax.experimental.pallas import tpu as pltpu


# ----------------------------------------------------------------------------- helpers


def _layer_norm(x, gamma, beta, eps=1e-5):
    mean = jnp.mean(x, axis=-1, keepdims=True)
    var = jnp.mean((x - mean) ** 2, axis=-1, keepdims=True)   # biased variance (torch LN)
    return (x - mean) * lax.rsqrt(var + eps) * gamma + beta


def _pe_table(timesteps, embed_size):
    # pe[t, i] = sin(t / 10000**(i/E)) for even i, cos(...) for odd i — matches the
    # PyTorch positional_encoding exactly (including the shared exponent i/E).
    t = np.arange(timesteps, dtype=np.float32)[:, None]
    i = np.arange(embed_size, dtype=np.float32)[None, :]
    angle = t / np.power(10000.0, i / float(embed_size))
    pe = np.where((np.arange(embed_size)[None, :] % 2) == 0, np.sin(angle), np.cos(angle))
    return jnp.asarray(pe, jnp.float32)


# ----------------------------------------------------------------------------- kernel


def _encoder_kernel(num_layers, heads,
                    x_ref, pe_ref, wqkv_ref, wo_ref, w1_ref, w2_ref, vec_ref,
                    o_ref, ho_ref):
    """Fused encoder forward for one batch chunk.

    x_ref:    (BC, S, E)   f32 activations
    pe_ref:   (S, E)       f32 positional-encoding table
    wqkv_ref: (L, E, 3E)   bf16, Q columns pre-scaled by 1/sqrt(head_dim)
    wo_ref:   (L, E, E)    bf16
    w1_ref:   (L, E, F)    bf16
    w2_ref:   (L, F, E)    bf16
    vec_ref:  (L, 6, W)    f32 rows: b1, b2, ln1g, ln1b, ln2g, ln2b (zero-padded to W)
    ho_ref:   (BC, S, E)   bf16 VMEM scratch — per-head attention outputs (concat layout)
    """
    BC, S, E = x_ref.shape
    F = w1_ref.shape[2]
    head_dim = E // heads

    # Positional encoding fused into the kernel; fold batch into the matmul M-dim.
    x = x_ref[...].astype(jnp.float32) + pe_ref[...][None, :, :]
    h0 = x.reshape(BC * S, E)

    def layer_body(l, h):
        wqkv = wqkv_ref[l]                               # (E, 3E) bf16
        wo = wo_ref[l]                                   # (E, E)  bf16
        w1 = w1_ref[l]                                   # (E, F)  bf16
        w2 = w2_ref[l]                                   # (F, E)  bf16
        vec = vec_ref[l].astype(jnp.float32)             # (6, W)  f32
        b1 = vec[0, :F]
        b2 = vec[1, :E]
        g1, be1 = vec[2, :E], vec[3, :E]
        g2, be2 = vec[4, :E], vec[5, :E]

        # ---- self-attention: one wide bf16 QKV matmul over the whole chunk ----
        qkv = jnp.dot(h.astype(wqkv.dtype), wqkv,
                      preferred_element_type=jnp.float32)            # (BC*S, 3E) f32
        qkv = qkv.reshape(BC, S, 3 * E)

        for hd in range(heads):                           # static unroll (heads is small)
            c = hd * head_dim
            q = qkv[:, :, c:c + head_dim].astype(wqkv.dtype)          # (BC, S, Hd)
            k = qkv[:, :, E + c:E + c + head_dim].astype(wqkv.dtype)
            v = qkv[:, :, 2 * E + c:2 * E + c + head_dim].astype(wqkv.dtype)
            # scale already folded into the Q projection columns
            s = jnp.einsum("bqd,bkd->bqk", q, k,
                           preferred_element_type=jnp.float32)        # (BC, S, S) f32
            s = s - jnp.max(s, axis=-1, keepdims=True)
            p = jnp.exp(s)
            p = p * pl.reciprocal(jnp.sum(p, axis=-1, keepdims=True), approx=True)
            ho = jnp.einsum("bqk,bkd->bqd", p.astype(wqkv.dtype), v,
                            preferred_element_type=jnp.float32)       # (BC, S, Hd)
            # write into the concat-layout scratch at this head's lane offset
            ho_ref[:, :, c:c + head_dim] = ho.astype(ho_ref.dtype)

        # ONE full-K (E-deep) output projection instead of H shallow-K matmuls.
        hcat = ho_ref[...].reshape(BC * S, E)
        attn = jnp.dot(hcat, wo, preferred_element_type=jnp.float32)  # (BC*S, E) f32

        # ---- residual + LN1, feed-forward, residual + LN2 (all f32 elementwise) ----
        h1 = _layer_norm(attn + h, g1, be1)
        f = jnp.maximum(
            jnp.dot(h1.astype(w1.dtype), w1, preferred_element_type=jnp.float32) + b1, 0.0)
        f = jnp.dot(f.astype(w2.dtype), w2, preferred_element_type=jnp.float32) + b2
        return _layer_norm(f + h1, g2, be2)

    h = lax.fori_loop(0, num_layers, layer_body, h0)
    o_ref[...] = h.reshape(BC, S, E).astype(o_ref.dtype)


# ----------------------------------------------------------------------------- wrappers


def pack_encoder_params(block_params, weight_dtype=jnp.bfloat16):
    """Host-side repack: fuse QKV (scale folded into Wq), cast matmul weights to bf16,
    consolidate small params (biases + LN affine) into one f32 (L, 6, W) slab."""
    H, E, Hd = block_params[0]["wq"].shape
    F = block_params[0]["w1"].shape[1]
    W = max(F, E)
    inv_scale = 1.0 / np.sqrt(np.float32(Hd))

    def fuse_heads(w):   # (H, E, Hd) -> (E, H*Hd); head h -> columns [h*Hd, (h+1)*Hd)
        return jnp.transpose(w, (1, 0, 2)).reshape(E, H * Hd)

    def pad_w(v):        # (n,) -> (W,)
        return jnp.pad(v, (0, W - v.shape[0]))

    wqkv, wo, w1, w2, vec = [], [], [], [], []
    for p in block_params:
        wq = fuse_heads(p["wq"]) * inv_scale          # fold 1/sqrt(head_dim) into Q proj
        wk = fuse_heads(p["wk"])
        wv = fuse_heads(p["wv"])
        wqkv.append(jnp.concatenate([wq, wk, wv], axis=1).astype(weight_dtype))   # (E, 3E)
        wo.append(p["wo"].astype(weight_dtype))
        w1.append(p["w1"].astype(weight_dtype))
        w2.append(p["w2"].astype(weight_dtype))
        vec.append(jnp.stack([pad_w(p["b1"][0]), pad_w(p["b2"][0]),
                              pad_w(p["ln1g"][0]), pad_w(p["ln1b"][0]),
                              pad_w(p["ln2g"][0]), pad_w(p["ln2b"][0])],
                             axis=0).astype(jnp.float32))                          # (6, W)
    return {"wqkv": jnp.stack(wqkv), "wo": jnp.stack(wo),
            "w1": jnp.stack(w1), "w2": jnp.stack(w2), "vec": jnp.stack(vec)}


def _vmem_limit_bytes():
    cap = 64 << 20
    try:
        cap = int(getattr(pltpu.get_tpu_info(), "vmem_capacity_bytes", cap))
    except Exception:
        pass
    # leave headroom; caps at ~54 MiB on v7x (64 MiB physical), 100 MiB on v5e/v6e.
    return min(int(cap * 0.85), 100 << 20)


def _pick_batch_chunk(B, S):
    """Largest batch chunk (best matmul M-dim) that keeps >=2 grid steps when possible
    (v7x megacore) and caps the slab at 512 rows so activations stay small in VMEM."""
    divisors = [c for c in range(1, B + 1) if B % c == 0]
    multi = [c for c in divisors if B // c >= 2]
    pool = multi if multi else divisors
    capped = [c for c in pool if c * S <= 512] or [pool[0]]
    return max(capped)


def transformer_encoder_forward(x, pe, packed, *, heads, batch_chunk=None):
    B, S, E = x.shape
    if batch_chunk is None:
        batch_chunk = _pick_batch_chunk(B, S)
    assert B % batch_chunk == 0, "batch must be divisible by batch_chunk"
    nchunks = B // batch_chunk
    L, _, F = packed["w1"].shape
    W = packed["vec"].shape[2]

    # ---- VMEM residency arithmetic for the all-layers-resident weight design ----
    vmem_limit = _vmem_limit_bytes()
    weight_bytes = sum(int(np.prod(a.shape)) * a.dtype.itemsize for a in packed.values())
    weight_bytes += int(np.prod(pe.shape)) * pe.dtype.itemsize
    act_bytes = 2 * batch_chunk * S * E * x.dtype.itemsize            # in + out blocks
    scratch_bytes = batch_chunk * S * E * 2                            # bf16 head-concat scratch
    est = 2 * (weight_bytes + act_bytes) + scratch_bytes               # default double buffering
    assert est <= vmem_limit, (
        f"resident weights+activations ~{est / 2**20:.1f} MiB exceed VMEM budget "
        f"{vmem_limit / 2**20:.1f} MiB; switch to per-layer weight streaming "
        f"(layer grid axis or emit_pipeline) for this model size.")

    kernel = functools.partial(_encoder_kernel, L, heads)

    def const_spec(shape):   # grid-invariant input (loaded once, no re-DMA across steps)
        n = len(shape)
        return pl.BlockSpec(shape, lambda i, _n=n: (0,) * _n)

    return pl.pallas_call(
        kernel,
        out_shape=jax.ShapeDtypeStruct((B, S, E), x.dtype),
        grid=(nchunks,),
        in_specs=[
            pl.BlockSpec((batch_chunk, S, E), lambda i: (i, 0, 0)),   # activations
            const_spec((S, E)),            # positional-encoding table
            const_spec((L, E, 3 * E)),     # fused QKV weights (bf16)
            const_spec((L, E, E)),         # output projection (bf16)
            const_spec((L, E, F)),         # FFN up (bf16)
            const_spec((L, F, E)),         # FFN down (bf16)
            const_spec((L, 6, W)),         # packed biases / LayerNorm params (f32)
        ],
        out_specs=pl.BlockSpec((batch_chunk, S, E), lambda i: (i, 0, 0)),
        scratch_shapes=[pltpu.VMEM((batch_chunk, S, E), jnp.bfloat16)],
        compiler_params=pltpu.CompilerParams(
            dimension_semantics=("parallel",),        # v7x: shard batch chunks across 2 TCs
            vmem_limit_bytes=vmem_limit),
    )(x, pe, packed["wqkv"], packed["wo"], packed["w1"], packed["w2"], packed["vec"])


# ----------------------------------------------------------------------------- params


def init_block_params(key, embed_size, heads, forward_neuron):
    head_dim = embed_size // heads
    assert head_dim * heads == embed_size
    ks = jax.random.split(key, 6)
    scale = 0.02
    return {
        "wq": scale * jax.random.normal(ks[0], (heads, embed_size, head_dim), jnp.float32),
        "wk": scale * jax.random.normal(ks[1], (heads, embed_size, head_dim), jnp.float32),
        "wv": scale * jax.random.normal(ks[2], (heads, embed_size, head_dim), jnp.float32),
        "wo": scale * jax.random.normal(ks[3], (embed_size, embed_size), jnp.float32),
        "w1": scale * jax.random.normal(ks[4], (embed_size, forward_neuron), jnp.float32),
        "b1": jnp.zeros((1, forward_neuron), jnp.float32),
        "w2": scale * jax.random.normal(ks[5], (forward_neuron, embed_size), jnp.float32),
        "b2": jnp.zeros((1, embed_size), jnp.float32),
        "ln1g": jnp.ones((1, embed_size), jnp.float32),
        "ln1b": jnp.zeros((1, embed_size), jnp.float32),
        "ln2g": jnp.ones((1, embed_size), jnp.float32),
        "ln2b": jnp.zeros((1, embed_size), jnp.float32),
    }


# ----------------------------------------------------------------------------- reference


def _ref_block(x, p):
    H, _, Hd = p["wq"].shape
    heads_out = []
    for h in range(H):
        q = x @ p["wq"][h]
        k = x @ p["wk"][h]
        v = x @ p["wv"][h]
        s = jnp.einsum("bqd,bkd->bqk", q, k) / jnp.sqrt(jnp.float32(Hd))
        a = jax.nn.softmax(s, axis=-1)
        heads_out.append(jnp.einsum("bqk,bkd->bqd", a, v))
    concat = jnp.concatenate(heads_out, axis=-1)
    attn = concat @ p["wo"]
    h1 = _layer_norm(attn + x, p["ln1g"][0], p["ln1b"][0])
    f = jnp.maximum(h1 @ p["w1"] + p["b1"][0], 0.0)
    f = f @ p["w2"] + p["b2"][0]
    return _layer_norm(f + h1, p["ln2g"][0], p["ln2b"][0])


def _ref_encoder(x, pe, block_params):
    out = x + pe
    for p in block_params:
        out = _ref_block(out, p)
    return out


# ----------------------------------------------------------------------------- main


if __name__ == "__main__":
    # Small but lane-dense shapes: E multiple of 128, S multiple of 8.
    B, S, E = 4, 16, 128
    heads, forward_neuron, num_transformers = 4, 256, 2

    key = jax.random.PRNGKey(0)
    key_x, key_p = jax.random.split(key)
    x = jax.random.normal(key_x, (B, S, E), jnp.float32)

    block_keys = jax.random.split(key_p, num_transformers)
    block_params = [init_block_params(k, E, heads, forward_neuron) for k in block_keys]
    pe = _pe_table(S, E)
    packed = pack_encoder_params(block_params)        # bf16 matmul weights

    out = transformer_encoder_forward(x, pe, packed, heads=heads)
    out = jax.block_until_ready(out)

    ref = _ref_encoder(x, pe, block_params)
    # bf16 MXU operands (f32 accumulation) + approx reciprocal => loosened tolerance
    # vs the pure-f32 reference (expected numerical drift per the perf review).
    np.testing.assert_allclose(np.asarray(out), np.asarray(ref), rtol=5e-2, atol=5e-2)

    print("KERNEL_OK")
</pallas_src>

<mosaic_0001>
module attributes {stable_mosaic.version = 11 : i64} {
  func.func @_encoder_kernel(%arg0: i32, %arg1: memref<2x16x128xf32, #tpu.memory_space<vmem>>, %arg2: memref<16x128xf32, #tpu.memory_space<vmem>>, %arg3: memref<2x128x384xbf16, #tpu.memory_space<vmem>>, %arg4: memref<2x128x128xbf16, #tpu.memory_space<vmem>>, %arg5: memref<2x128x256xbf16, #tpu.memory_space<vmem>>, %arg6: memref<2x256x128xbf16, #tpu.memory_space<vmem>>, %arg7: memref<2x6x256xf32, #tpu.memory_space<vmem>>, %arg8: memref<2x16x128xf32, #tpu.memory_space<vmem>>, %arg9: memref<2x16x128xbf16, #tpu.memory_space<vmem>>) attributes {dimension_semantics = [#tpu.dimension_semantics<parallel>], iteration_bounds = array<i64: 2>, scalar_prefetch = 0 : i64, scratch_operands = 1 : i64, tpu.core_type = #tpu.core_type<tc>, window_params = [{transform_indices = @transform_0, window_bounds = array<i64: 2, 16, 128>}, {pipeline_mode = #tpu.pipeline_mode<synchronous>, transform_indices = @transform_1, window_bounds = array<i64: 16, 128>}, {pipeline_mode = #tpu.pipeline_mode<synchronous>, transform_indices = @transform_2, window_bounds = array<i64: 2, 128, 384>}, {pipeline_mode = #tpu.pipeline_mode<synchronous>, transform_indices = @transform_3, window_bounds = array<i64: 2, 128, 128>}, {pipeline_mode = #tpu.pipeline_mode<synchronous>, transform_indices = @transform_4, window_bounds = array<i64: 2, 128, 256>}, {pipeline_mode = #tpu.pipeline_mode<synchronous>, transform_indices = @transform_5, window_bounds = array<i64: 2, 256, 128>}, {pipeline_mode = #tpu.pipeline_mode<synchronous>, transform_indices = @transform_6, window_bounds = array<i64: 2, 6, 256>}, {transform_indices = @transform_7, window_bounds = array<i64: 2, 16, 128>}]} {
    %c0 = arith.constant 0 : index
    %c0_0 = arith.constant 0 : index
    %c0_1 = arith.constant 0 : index
    %0 = vector.load %arg1[%c0, %c0_0, %c0_1] : memref<2x16x128xf32, #tpu.memory_space<vmem>>, vector<2x16x128xf32>
    %c0_2 = arith.constant 0 : index
    %c0_3 = arith.constant 0 : index
    %1 = vector.load %arg2[%c0_2, %c0_3] : memref<16x128xf32, #tpu.memory_space<vmem>>, vector<16x128xf32>
    %2 = vector.shape_cast %1 : vector<16x128xf32> to vector<1x16x128xf32>
    %3 = vector.broadcast %2 : vector<1x16x128xf32> to vector<2x16x128xf32>
    %4 = arith.addf %0, %3 : vector<2x16x128xf32>
    %5 = vector.shape_cast %4 : vector<2x16x128xf32> to vector<32x128xf32>
    %c0_i32 = arith.constant 0 : i32
    %c2_i32 = arith.constant 2 : i32
    %6 = arith.addi %c0_i32, %c2_i32 : i32
    %c1_i32 = arith.constant 1 : i32
    %7 = scf.for %arg10 = %c0_i32 to %6 step %c1_i32 iter_args(%arg11 = %5) -> (vector<32x128xf32>)  : i32 {
      %10 = arith.index_cast %arg10 : i32 to index
      %c0_8 = arith.constant 0 : index
      %c0_9 = arith.constant 0 : index
      %11 = vector.load %arg3[%10, %c0_8, %c0_9] : memref<2x128x384xbf16, #tpu.memory_space<vmem>>, vector<1x128x384xbf16>
      %12 = vector.shape_cast %11 : vector<1x128x384xbf16> to vector<128x384xbf16>
      %13 = arith.index_cast %arg10 : i32 to index
      %c0_10 = arith.constant 0 : index
      %c0_11 = arith.constant 0 : index
      %14 = vector.load %arg4[%13, %c0_10, %c0_11] : memref<2x128x128xbf16, #tpu.memory_space<vmem>>, vector<1x128x128xbf16>
      %15 = vector.shape_cast %14 : vector<1x128x128xbf16> to vector<128x128xbf16>
      %16 = arith.index_cast %arg10 : i32 to index
      %c0_12 = arith.constant 0 : index
      %c0_13 = arith.constant 0 : index
      %17 = vector.load %arg5[%16, %c0_12, %c0_13] : memref<2x128x256xbf16, #tpu.memory_space<vmem>>, vector<1x128x256xbf16>
      %18 = vector.shape_cast %17 : vector<1x128x256xbf16> to vector<128x256xbf16>
      %19 = arith.index_cast %arg10 : i32 to index
      %c0_14 = arith.constant 0 : index
      %c0_15 = arith.constant 0 : index
      %20 = vector.load %arg6[%19, %c0_14, %c0_15] : memref<2x256x128xbf16, #tpu.memory_space<vmem>>, vector<1x256x128xbf16>
      %21 = vector.shape_cast %20 : vector<1x256x128xbf16> to vector<256x128xbf16>
      %22 = arith.index_cast %arg10 : i32 to index
      %c0_16 = arith.constant 0 : index
      %c0_17 = arith.constant 0 : index
      %23 = vector.load %arg7[%22, %c0_16, %c0_17] : memref<2x6x256xf32, #tpu.memory_space<vmem>>, vector<1x6x256xf32>
      %24 = vector.shape_cast %23 : vector<1x6x256xf32> to vector<6x256xf32>
      %25 = vector.extract_strided_slice %24 {offsets = [0, 0], sizes = [1, 256], strides = [1, 1]} : vector<6x256xf32> to vector<1x256xf32>
      %26 = vector.shape_cast %25 : vector<1x256xf32> to vector<256xf32>
      %27 = vector.extract_strided_slice %24 {offsets = [1, 0], sizes = [1, 128], strides = [1, 1]} : vector<6x256xf32> to vector<1x128xf32>
      %28 = vector.shape_cast %27 : vector<1x128xf32> to vector<128xf32>
      %29 = vector.extract_strided_slice %24 {offsets = [2, 0], sizes = [1, 128], strides = [1, 1]} : vector<6x256xf32> to vector<1x128xf32>
      %30 = vector.shape_cast %29 : vector<1x128xf32> to vector<128xf32>
      %31 = vector.extract_strided_slice %24 {offsets = [3, 0], sizes = [1, 128], strides = [1, 1]} : vector<6x256xf32> to vector<1x128xf32>
      %32 = vector.shape_cast %31 : vector<1x128xf32> to vector<128xf32>
      %33 = vector.extract_strided_slice %24 {offsets = [4, 0], sizes = [1, 128], strides = [1, 1]} : vector<6x256xf32> to vector<1x128xf32>
      %34 = vector.shape_cast %33 : vector<1x128xf32> to vector<128xf32>
      %35 = vector.extract_strided_slice %24 {offsets = [5, 0], sizes = [1, 128], strides = [1, 1]} : vector<6x256xf32> to vector<1x128xf32>
      %36 = vector.shape_cast %35 : vector<1x128xf32> to vector<128xf32>
      %37 = arith.truncf %arg11 : vector<32x128xf32> to vector<32x128xbf16>
      %cst = arith.constant dense<0.000000e+00> : vector<32x384xf32>
      %38 = tpu.matmul %37, %12, %cst {dimension_numbers = #tpu.dot_dimension_numbers<[1], [0], [0], [1], [0, 0, 1, 1], [], []>} : vector<32x128xbf16>, vector<128x384xbf16>, vector<32x384xf32> -> vector<32x384xf32>
      %39 = vector.shape_cast %38 : vector<32x384xf32> to vector<2x16x384xf32>
      %40 = vector.extract_strided_slice %39 {offsets = [0, 0, 0], sizes = [2, 16, 32], strides = [1, 1, 1]} : vector<2x16x384xf32> to vector<2x16x32xf32>
      %41 = arith.truncf %40 : vector<2x16x32xf32> to vector<2x16x32xbf16>
      %42 = vector.extract_strided_slice %39 {offsets = [0, 0, 128], sizes = [2, 16, 32], strides = [1, 1, 1]} : vector<2x16x384xf32> to vector<2x16x32xf32>
      %43 = arith.truncf %42 : vector<2x16x32xf32> to vector<2x16x32xbf16>
      %44 = vector.extract_strided_slice %39 {offsets = [0, 0, 256], sizes = [2, 16, 32], strides = [1, 1, 1]} : vector<2x16x384xf32> to vector<2x16x32xf32>
      %45 = arith.truncf %44 : vector<2x16x32xf32> to vector<2x16x32xbf16>
      "tpu.trace_start"() <{level = 10 : i32, message = "bqd,bkd->bqk"}> : () -> ()
      %cst_18 = arith.constant dense<0.000000e+00> : vector<2x16x16xf32>
      %46 = tpu.matmul %41, %43, %cst_18 {dimension_numbers = #tpu.dot_dimension_numbers<[2], [2], [1], [1], [0, 0, 0, 1, 1, 1], [0], [0]>} : vector<2x16x32xbf16>, vector<2x16x32xbf16>, vector<2x16x16xf32> -> vector<2x16x16xf32>
      "tpu.trace_stop"() : () -> ()
      %cst_19 = arith.constant dense<0xFF800000> : vector<2x16xf32>
      %47 = vector.multi_reduction <maximumf>, %46, %cst_19 [2] : vector<2x16x16xf32> to vector<2x16xf32>
      %48 = vector.shape_cast %47 : vector<2x16xf32> to vector<2x16x1xf32>
      %49 = vector.broadcast %48 : vector<2x16x1xf32> to vector<2x16x16xf32>
      %50 = arith.subf %46, %49 : vector<2x16x16xf32>
      %51 = math.exp %50 : vector<2x16x16xf32>
      %cst_20 = arith.constant dense<0.000000e+00> : vector<2x16xf32>
      %52 = vector.multi_reduction <add>, %51, %cst_20 [2] : vector<2x16x16xf32> to vector<2x16xf32>
      %53 = vector.shape_cast %52 : vector<2x16xf32> to vector<2x16x1xf32>
      %54 = tpu.reciprocal %53 {approx = true} : vector<2x16x1xf32> -> vector<2x16x1xf32>
      %55 = vector.broadcast %54 : vector<2x16x1xf32> to vector<2x16x16xf32>
      %56 = arith.mulf %51, %55 : vector<2x16x16xf32>
      %57 = arith.truncf %56 : vector<2x16x16xf32> to vector<2x16x16xbf16>
      "tpu.trace_start"() <{level = 10 : i32, message = "bqk,bkd->bqd"}> : () -> ()
      %cst_21 = arith.constant dense<0.000000e+00> : vector<2x16x32xf32>
      %58 = tpu.matmul %57, %45, %cst_21 {dimension_numbers = #tpu.dot_dimension_numbers<[2], [1], [1], [2], [0, 0, 0, 1, 1, 2], [0], [0]>} : vector<2x16x16xbf16>, vector<2x16x32xbf16>, vector<2x16x32xf32> -> vector<2x16x32xf32>
      "tpu.trace_stop"() : () -> ()
      %59 = arith.truncf %58 : vector<2x16x32xf32> to vector<2x16x32xbf16>
      %c0_22 = arith.constant 0 : index
      %c0_23 = arith.constant 0 : index
      %c0_24 = arith.constant 0 : index
      %60 = vector.load %arg9[%c0_22, %c0_23, %c0_24] : memref<2x16x128xbf16, #tpu.memory_space<vmem>>, vector<2x16x32xbf16>
      tpu.vector_store %arg9[%c0_22, %c0_23, %c0_24], %59 {strides = array<i32>} : memref<2x16x128xbf16, #tpu.memory_space<vmem>>, vector<2x16x32xbf16>,
      %61 = vector.extract_strided_slice %39 {offsets = [0, 0, 32], sizes = [2, 16, 32], strides = [1, 1, 1]} : vector<2x16x384xf32> to vector<2x16x32xf32>
      %62 = arith.truncf %61 : vector<2x16x32xf32> to vector<2x16x32xbf16>
      %63 = vector.extract_strided_slice %39 {offsets = [0, 0, 160], sizes = [2, 16, 32], strides = [1, 1, 1]} : vector<2x16x384xf32> to vector<2x16x32xf32>
      %64 = arith.truncf %63 : vector<2x16x32xf32> to vector<2x16x32xbf16>
      %65 = vector.extract_strided_slice %39 {offsets = [0, 0, 288], sizes = [2, 16, 32], strides = [1, 1, 1]} : vector<2x16x384xf32> to vector<2x16x32xf32>
      %66 = arith.truncf %65 : vector<2x16x32xf32> to vector<2x16x32xbf16>
      "tpu.trace_start"() <{level = 10 : i32, message = "bqd,bkd->bqk"}> : () -> ()
      %cst_25 = arith.constant dense<0.000000e+00> : vector<2x16x16xf32>
      %67 = tpu.matmul %62, %64, %cst_25 {dimension_numbers = #tpu.dot_dimension_numbers<[2], [2], [1], [1], [0, 0, 0, 1, 1, 1], [0], [0]>} : vector<2x16x32xbf16>, vector<2x16x32xbf16>, vector<2x16x16xf32> -> vector<2x16x16xf32>
      "tpu.trace_stop"() : () -> ()
      %cst_26 = arith.constant dense<0xFF800000> : vector<2x16xf32>
      %68 = vector.multi_reduction <maximumf>, %67, %cst_26 [2] : vector<2x16x16xf32> to vector<2x16xf32>
      %69 = vector.shape_cast %68 : vector<2x16xf32> to vector<2x16x1xf32>
      %70 = vector.broadcast %69 : vector<2x16x1xf32> to vector<2x16x16xf32>
      %71 = arith.subf %67, %70 : vector<2x16x16xf32>
      %72 = math.exp %71 : vector<2x16x16xf32>
      %cst_27 = arith.constant dense<0.000000e+00> : vector<2x16xf32>
      %73 = vector.multi_reduction <add>, %72, %cst_27 [2] : vector<2x16x16xf32> to vector<2x16xf32>
      %74 = vector.shape_cast %73 : vector<2x16xf32> to vector<2x16x1xf32>
      %75 = tpu.reciprocal %74 {approx = true} : vector<2x16x1xf32> -> vector<2x16x1xf32>
      %76 = vector.broadcast %75 : vector<2x16x1xf32> to vector<2x16x16xf32>
      %77 = arith.mulf %72, %76 : vector<2x16x16xf32>
      %78 = arith.truncf %77 : vector<2x16x16xf32> to vector<2x16x16xbf16>
      "tpu.trace_start"() <{level = 10 : i32, message = "bqk,bkd->bqd"}> : () -> ()
      %cst_28 = arith.constant dense<0.000000e+00> : vector<2x16x32xf32>
      %79 = tpu.matmul %78, %66, %cst_28 {dimension_numbers = #tpu.dot_dimension_numbers<[2], [1], [1], [2], [0, 0, 0, 1, 1, 2], [0], [0]>} : vector<2x16x16xbf16>, vector<2x16x32xbf16>, vector<2x16x32xf32> -> vector<2x16x32xf32>
      "tpu.trace_stop"() : () -> ()
      %80 = arith.truncf %79 : vector<2x16x32xf32> to vector<2x16x32xbf16>
      %c0_29 = arith.constant 0 : index
      %c0_30 = arith.constant 0 : index
      %c32 = arith.constant 32 : index
      %81 = vector.load %arg9[%c0_29, %c0_30, %c32] : memref<2x16x128xbf16, #tpu.memory_space<vmem>>, vector<2x16x32xbf16>
      tpu.vector_store %arg9[%c0_29, %c0_30, %c32], %80 {strides = array<i32>} : memref<2x16x128xbf16, #tpu.memory_space<vmem>>, vector<2x16x32xbf16>,
      %82 = vector.extract_strided_slice %39 {offsets = [0, 0, 64], sizes = [2, 16, 32], strides = [1, 1, 1]} : vector<2x16x384xf32> to vector<2x16x32xf32>
      %83 = arith.truncf %82 : vector<2x16x32xf32> to vector<2x16x32xbf16>
      %84 = vector.extract_strided_slice %39 {offsets = [0, 0, 192], sizes = [2, 16, 32], strides = [1, 1, 1]} : vector<2x16x384xf32> to vector<2x16x32xf32>
      %85 = arith.truncf %84 : vector<2x16x32xf32> to vector<2x16x32xbf16>
      %86 = vector.extract_strided_slice %39 {offsets = [0, 0, 320], sizes = [2, 16, 32], strides = [1, 1, 1]} : vector<2x16x384xf32> to vector<2x16x32xf32>
      %87 = arith.truncf %86 : vector<2x16x32xf32> to vector<2x16x32xbf16>
      "tpu.trace_start"() <{level = 10 : i32, message = "bqd,bkd->bqk"}> : () -> ()
      %cst_31 = arith.constant dense<0.000000e+00> : vector<2x16x16xf32>
      %88 = tpu.matmul %83, %85, %cst_31 {dimension_numbers = #tpu.dot_dimension_numbers<[2], [2], [1], [1], [0, 0, 0, 1, 1, 1], [0], [0]>} : vector<2x16x32xbf16>, vector<2x16x32xbf16>, vector<2x16x16xf32> -> vector<2x16x16xf32>
      "tpu.trace_stop"() : () -> ()
      %cst_32 = arith.constant dense<0xFF800000> : vector<2x16xf32>
      %89 = vector.multi_reduction <maximumf>, %88, %cst_32 [2] : vector<2x16x16xf32> to vector<2x16xf32>
      %90 = vector.shape_cast %89 : vector<2x16xf32> to vector<2x16x1xf32>
      %91 = vector.broadcast %90 : vector<2x16x1xf32> to vector<2x16x16xf32>
      %92 = arith.subf %88, %91 : vector<2x16x16xf32>
      %93 = math.exp %92 : vector<2x16x16xf32>
      %cst_33 = arith.constant dense<0.000000e+00> : vector<2x16xf32>
      %94 = vector.multi_reduction <add>, %93, %cst_33 [2] : vector<2x16x16xf32> to vector<2x16xf32>
      %95 = vector.shape_cast %94 : vector<2x16xf32> to vector<2x16x1xf32>
      %96 = tpu.reciprocal %95 {approx = true} : vector<2x16x1xf32> -> vector<2x16x1xf32>
      %97 = vector.broadcast %96 : vector<2x16x1xf32> to vector<2x16x16xf32>
      %98 = arith.mulf %93, %97 : vector<2x16x16xf32>
      %99 = arith.truncf %98 : vector<2x16x16xf32> to vector<2x16x16xbf16>
      "tpu.trace_start"() <{level = 10 : i32, message = "bqk,bkd->bqd"}> : () -> ()
      %cst_34 = arith.constant dense<0.000000e+00> : vector<2x16x32xf32>
      %100 = tpu.matmul %99, %87, %cst_34 {dimension_numbers = #tpu.dot_dimension_numbers<[2], [1], [1], [2], [0, 0, 0, 1, 1, 2], [0], [0]>} : vector<2x16x16xbf16>, vector<2x16x32xbf16>, vector<2x16x32xf32> -> vector<2x16x32xf32>
      "tpu.trace_stop"() : () -> ()
      %101 = arith.truncf %100 : vector<2x16x32xf32> to vector<2x16x32xbf16>
      %c0_35 = arith.constant 0 : index
      %c0_36 = arith.constant 0 : index
      %c64 = arith.constant 64 : index
      %102 = vector.load %arg9[%c0_35, %c0_36, %c64] : memref<2x16x128xbf16, #tpu.memory_space<vmem>>, vector<2x16x32xbf16>
      tpu.vector_store %arg9[%c0_35, %c0_36, %c64], %101 {strides = array<i32>} : memref<2x16x128xbf16, #tpu.memory_space<vmem>>, vector<2x16x32xbf16>,
      %103 = vector.extract_strided_slice %39 {offsets = [0, 0, 96], sizes = [2, 16, 32], strides = [1, 1, 1]} : vector<2x16x384xf32> to vector<2x16x32xf32>
      %104 = arith.truncf %103 : vector<2x16x32xf32> to vector<2x16x32xbf16>
      %105 = vector.extract_strided_slice %39 {offsets = [0, 0, 224], sizes = [2, 16, 32], strides = [1, 1, 1]} : vector<2x16x384xf32> to vector<2x16x32xf32>
      %106 = arith.truncf %105 : vector<2x16x32xf32> to vector<2x16x32xbf16>
      %107 = vector.extract_strided_slice %39 {offsets = [0, 0, 352], sizes = [2, 16, 32], strides = [1, 1, 1]} : vector<2x16x384xf32> to vector<2x16x32xf32>
      %108 = arith.truncf %107 : vector<2x16x32xf32> to vector<2x16x32xbf16>
      "tpu.trace_start"() <{level = 10 : i32, message = "bqd,bkd->bqk"}> : () -> ()
      %cst_37 = arith.constant dense<0.000000e+00> : vector<2x16x16xf32>
      %109 = tpu.matmul %104, %106, %cst_37 {dimension_numbers = #tpu.dot_dimension_numbers<[2], [2], [1], [1], [0, 0, 0, 1, 1, 1], [0], [0]>} : vector<2x16x32xbf16>, vector<2x16x32xbf16>, vector<2x16x16xf32> -> vector<2x16x16xf32>
      "tpu.trace_stop"() : () -> ()
      %cst_38 = arith.constant dense<0xFF800000> : vector<2x16xf32>
      %110 = vector.multi_reduction <maximumf>, %109, %cst_38 [2] : vector<2x16x16xf32> to vector<2x16xf32>
      %111 = vector.shape_cast %110 : vector<2x16xf32> to vector<2x16x1xf32>
      %112 = vector.broadcast %111 : vector<2x16x1xf32> to vector<2x16x16xf32>
      %113 = arith.subf %109, %112 : vector<2x16x16xf32>
      %114 = math.exp %113 : vector<2x16x16xf32>
      %cst_39 = arith.constant dense<0.000000e+00> : vector<2x16xf32>
      %115 = vector.multi_reduction <add>, %114, %cst_39 [2] : vector<2x16x16xf32> to vector<2x16xf32>
      %116 = vector.shape_cast %115 : vector<2x16xf32> to vector<2x16x1xf32>
      %117 = tpu.reciprocal %116 {approx = true} : vector<2x16x1xf32> -> vector<2x16x1xf32>
      %118 = vector.broadcast %117 : vector<2x16x1xf32> to vector<2x16x16xf32>
      %119 = arith.mulf %114, %118 : vector<2x16x16xf32>
      %120 = arith.truncf %119 : vector<2x16x16xf32> to vector<2x16x16xbf16>
      "tpu.trace_start"() <{level = 10 : i32, message = "bqk,bkd->bqd"}> : () -> ()
      %cst_40 = arith.constant dense<0.000000e+00> : vector<2x16x32xf32>
      %121 = tpu.matmul %120, %108, %cst_40 {dimension_numbers = #tpu.dot_dimension_numbers<[2], [1], [1], [2], [0, 0, 0, 1, 1, 2], [0], [0]>} : vector<2x16x16xbf16>, vector<2x16x32xbf16>, vector<2x16x32xf32> -> vector<2x16x32xf32>
      "tpu.trace_stop"() : () -> ()
      %122 = arith.truncf %121 : vector<2x16x32xf32> to vector<2x16x32xbf16>
      %c0_41 = arith.constant 0 : index
      %c0_42 = arith.constant 0 : index
      %c96 = arith.constant 96 : index
      %123 = vector.load %arg9[%c0_41, %c0_42, %c96] : memref<2x16x128xbf16, #tpu.memory_space<vmem>>, vector<2x16x32xbf16>
      tpu.vector_store %arg9[%c0_41, %c0_42, %c96], %122 {strides = array<i32>} : memref<2x16x128xbf16, #tpu.memory_space<vmem>>, vector<2x16x32xbf16>,
      %c0_43 = arith.constant 0 : index
      %c0_44 = arith.constant 0 : index
      %c0_45 = arith.constant 0 : index
      %124 = vector.load %arg9[%c0_43, %c0_44, %c0_45] : memref<2x16x128xbf16, #tpu.memory_space<vmem>>, vector<2x16x128xbf16>
      %125 = vector.shape_cast %124 : vector<2x16x128xbf16> to vector<32x128xbf16>
      %cst_46 = arith.constant dense<0.000000e+00> : vector<32x128xf32>
      %126 = tpu.matmul %125, %15, %cst_46 {dimension_numbers = #tpu.dot_dimension_numbers<[1], [0], [0], [1], [0, 0, 1, 1], [], []>} : vector<32x128xbf16>, vector<128x128xbf16>, vector<32x128xf32> -> vector<32x128xf32>
      %127 = arith.addf %126, %arg11 : vector<32x128xf32>
      %cst_47 = arith.constant dense<0.000000e+00> : vector<32xf32>
      %128 = vector.multi_reduction <add>, %127, %cst_47 [1] : vector<32x128xf32> to vector<32xf32>
      %129 = vector.shape_cast %128 : vector<32xf32> to vector<32x1xf32>
      %cst_48 = arith.constant 1.280000e+02 : f32
      %130 = vector.broadcast %cst_48 : f32 to vector<32x1xf32>
      %131 = arith.divf %129, %130 : vector<32x1xf32>
      %132 = vector.broadcast %131 : vector<32x1xf32> to vector<32x128xf32>
      %133 = arith.subf %127, %132 : vector<32x128xf32>
      %134 = arith.mulf %133, %133 : vector<32x128xf32>
      %cst_49 = arith.constant dense<0.000000e+00> : vector<32xf32>
      %135 = vector.multi_reduction <add>, %134, %cst_49 [1] : vector<32x128xf32> to vector<32xf32>
      %136 = vector.shape_cast %135 : vector<32xf32> to vector<32x1xf32>
      %cst_50 = arith.constant 1.280000e+02 : f32
      %137 = vector.broadcast %cst_50 : f32 to vector<32x1xf32>
      %138 = arith.divf %136, %137 : vector<32x1xf32>
      %139 = vector.broadcast %131 : vector<32x1xf32> to vector<32x128xf32>
      %140 = arith.subf %127, %139 : vector<32x128xf32>
      %cst_51 = arith.constant 9.99999974E-6 : f32
      %141 = vector.broadcast %cst_51 : f32 to vector<32x1xf32>
      %142 = arith.addf %138, %141 : vector<32x1xf32>
      %143 = math.rsqrt %142 : vector<32x1xf32>
      %144 = vector.broadcast %143 : vector<32x1xf32> to vector<32x128xf32>
      %145 = arith.mulf %140, %144 : vector<32x128xf32>
      %146 = vector.shape_cast %30 : vector<128xf32> to vector<1x128xf32>
      %147 = vector.broadcast %146 : vector<1x128xf32> to vector<32x128xf32>
      %148 = arith.mulf %145, %147 : vector<32x128xf32>
      %149 = vector.shape_cast %32 : vector<128xf32> to vector<1x128xf32>
      %150 = vector.broadcast %149 : vector<1x128xf32> to vector<32x128xf32>
      %151 = arith.addf %148, %150 : vector<32x128xf32>
      %152 = arith.truncf %151 : vector<32x128xf32> to vector<32x128xbf16>
      %cst_52 = arith.constant dense<0.000000e+00> : vector<32x256xf32>
      %153 = tpu.matmul %152, %18, %cst_52 {dimension_numbers = #tpu.dot_dimension_numbers<[1], [0], [0], [1], [0, 0, 1, 1], [], []>} : vector<32x128xbf16>, vector<128x256xbf16>, vector<32x256xf32> -> vector<32x256xf32>
      %154 = vector.shape_cast %26 : vector<256xf32> to vector<1x256xf32>
      %155 = vector.broadcast %154 : vector<1x256xf32> to vector<32x256xf32>
      %156 = arith.addf %153, %155 : vector<32x256xf32>
      %cst_53 = arith.constant 0.000000e+00 : f32
      %157 = vector.broadcast %cst_53 : f32 to vector<32x256xf32>
      %158 = arith.maximumf %156, %157 : vector<32x256xf32>
      %159 = arith.truncf %158 : vector<32x256xf32> to vector<32x256xbf16>
      %cst_54 = arith.constant dense<0.000000e+00> : vector<32x128xf32>
      %160 = tpu.matmul %159, %21, %cst_54 {dimension_numbers = #tpu.dot_dimension_numbers<[1], [0], [0], [1], [0, 0, 1, 1], [], []>} : vector<32x256xbf16>, vector<256x128xbf16>, vector<32x128xf32> -> vector<32x128xf32>
      %161 = vector.shape_cast %28 : vector<128xf32> to vector<1x128xf32>
      %162 = vector.broadcast %161 : vector<1x128xf32> to vector<32x128xf32>
      %163 = arith.addf %160, %162 : vector<32x128xf32>
      %164 = arith.addf %163, %151 : vector<32x128xf32>
      %cst_55 = arith.constant dense<0.000000e+00> : vector<32xf32>
      %165 = vector.multi_reduction <add>, %164, %cst_55 [1] : vector<32x128xf32> to vector<32xf32>
      %166 = vector.shape_cast %165 : vector<32xf32> to vector<32x1xf32>
      %cst_56 = arith.constant 1.280000e+02 : f32
      %167 = vector.broadcast %cst_56 : f32 to vector<32x1xf32>
      %168 = arith.divf %166, %167 : vector<32x1xf32>
      %169 = vector.broadcast %168 : vector<32x1xf32> to vector<32x128xf32>
      %170 = arith.subf %164, %169 : vector<32x128xf32>
      %171 = arith.mulf %170, %170 : vector<32x128xf32>
      %cst_57 = arith.constant dense<0.000000e+00> : vector<32xf32>
      %172 = vector.multi_reduction <add>, %171, %cst_57 [1] : vector<32x128xf32> to vector<32xf32>
      %173 = vector.shape_cast %172 : vector<32xf32> to vector<32x1xf32>
      %cst_58 = arith.constant 1.280000e+02 : f32
      %174 = vector.broadcast %cst_58 : f32 to vector<32x1xf32>
      %175 = arith.divf %173, %174 : vector<32x1xf32>
      %176 = vector.broadcast %168 : vector<32x1xf32> to vector<32x128xf32>
      %177 = arith.subf %164, %176 : vector<32x128xf32>
      %cst_59 = arith.constant 9.99999974E-6 : f32
      %178 = vector.broadcast %cst_59 : f32 to vector<32x1xf32>
      %179 = arith.addf %175, %178 : vector<32x1xf32>
      %180 = math.rsqrt %179 : vector<32x1xf32>
      %181 = vector.broadcast %180 : vector<32x1xf32> to vector<32x128xf32>
      %182 = arith.mulf %177, %181 : vector<32x128xf32>
      %183 = vector.shape_cast %34 : vector<128xf32> to vector<1x128xf32>
      %184 = vector.broadcast %183 : vector<1x128xf32> to vector<32x128xf32>
      %185 = arith.mulf %182, %184 : vector<32x128xf32>
      %186 = vector.shape_cast %36 : vector<128xf32> to vector<1x128xf32>
      %187 = vector.broadcast %186 : vector<1x128xf32> to vector<32x128xf32>
      %188 = arith.addf %185, %187 : vector<32x128xf32>
      scf.yield %188 : vector<32x128xf32>
    }
    %c2_i32_4 = arith.constant 2 : i32
    %8 = vector.shape_cast %7 : vector<32x128xf32> to vector<2x16x128xf32>
    %c0_5 = arith.constant 0 : index
    %c0_6 = arith.constant 0 : index
    %c0_7 = arith.constant 0 : index
    %9 = vector.load %arg8[%c0_5, %c0_6, %c0_7] : memref<2x16x128xf32, #tpu.memory_space<vmem>>, vector<2x16x128xf32>
    tpu.vector_store %arg8[%c0_5, %c0_6, %c0_7], %8 {strides = array<i32>} : memref<2x16x128xf32, #tpu.memory_space<vmem>>, vector<2x16x128xf32>,
    return
  }
  func.func @transform_0(%arg0: i32) -> (i32, i32, i32) {
    %c0_i32 = arith.constant 0 : i32
    %c0_i32_0 = arith.constant 0 : i32
    %c0_i32_1 = arith.constant 0 : i32
    return %arg0, %c0_i32, %c0_i32_0 : i32, i32, i32
  }
  func.func @transform_1(%arg0: i32) -> (i32, i32) {
    %c0_i32 = arith.constant 0 : i32
    %c0_i32_0 = arith.constant 0 : i32
    %c0_i32_1 = arith.constant 0 : i32
    return %c0_i32, %c0_i32_0 : i32, i32
  }
  func.func @transform_2(%arg0: i32) -> (i32, i32, i32) {
    %c0_i32 = arith.constant 0 : i32
    %c0_i32_0 = arith.constant 0 : i32
    %c0_i32_1 = arith.constant 0 : i32
    %c0_i32_2 = arith.constant 0 : i32
    return %c0_i32, %c0_i32_0, %c0_i32_1 : i32, i32, i32
  }
  func.func @transform_3(%arg0: i32) -> (i32, i32, i32) {
    %c0_i32 = arith.constant 0 : i32
    %c0_i32_0 = arith.constant 0 : i32
    %c0_i32_1 = arith.constant 0 : i32
    %c0_i32_2 = arith.constant 0 : i32
    return %c0_i32, %c0_i32_0, %c0_i32_1 : i32, i32, i32
  }
  func.func @transform_4(%arg0: i32) -> (i32, i32, i32) {
    %c0_i32 = arith.constant 0 : i32
    %c0_i32_0 = arith.constant 0 : i32
    %c0_i32_1 = arith.constant 0 : i32
    %c0_i32_2 = arith.constant 0 : i32
    return %c0_i32, %c0_i32_0, %c0_i32_1 : i32, i32, i32
  }
  func.func @transform_5(%arg0: i32) -> (i32, i32, i32) {
    %c0_i32 = arith.constant 0 : i32
    %c0_i32_0 = arith.constant 0 : i32
    %c0_i32_1 = arith.constant 0 : i32
    %c0_i32_2 = arith.constant 0 : i32
    return %c0_i32, %c0_i32_0, %c0_i32_1 : i32, i32, i32
  }
  func.func @transform_6(%arg0: i32) -> (i32, i32, i32) {
    %c0_i32 = arith.constant 0 : i32
    %c0_i32_0 = arith.constant 0 : i32
    %c0_i32_1 = arith.constant 0 : i32
    %c0_i32_2 = arith.constant 0 : i32
    return %c0_i32, %c0_i32_0, %c0_i32_1 : i32, i32, i32
  }
  func.func @transform_7(%arg0: i32) -> (i32, i32, i32) {
    %c0_i32 = arith.constant 0 : i32
    %c0_i32_0 = arith.constant 0 : i32
    %c0_i32_1 = arith.constant 0 : i32
    return %arg0, %c0_i32, %c0_i32_0 : i32, i32, i32
  }
}

</mosaic_0001>

<llo_original>
// kernel: tpu_custom_call.1
$region0: #{tpu_custom_call.1}
  #allocation0 [shape = 'u32[]', space=smem, size = 0x4, offset = 0x4, fixed_abs, tag = 'smem constant byte address 0x4 - core index']
  #allocation1 [shape = 'u32[72,128]{1,0:T(1,128)}', space=vmem, size = 0x9000, scoped, tag = 'internal scratch']
  #allocation2 [shape = 'bf16[2,16,128]{2,1,0:T(8,128)(2,1)}', space=vmem, size = 0x2000, scoped, tag = 'scratch operand']
  %s0 = inlined_call_operand.hbm [shape: f32[4,16,128], index: 0, kind: input, shape index: {}]
  %s1 = inlined_call_operand.vmem [shape: f32[16,128], index: 1, kind: input, shape index: {}]
  %s2 = inlined_call_operand.hbm [shape: bf16[2,128,384], index: 2, kind: input, shape index: {}]
  %s3 = inlined_call_operand.hbm [shape: bf16[2,128,128], index: 3, kind: input, shape index: {}]
  %s4 = inlined_call_operand.hbm [shape: bf16[2,128,256], index: 4, kind: input, shape index: {}]
  %s5 = inlined_call_operand.hbm [shape: bf16[2,256,128], index: 5, kind: input, shape index: {}]
  %s6 = inlined_call_operand.vmem [shape: f32[2,6,256], index: 6, kind: input, shape index: {}]
  %s7 = inlined_call_operand.hbm [shape: f32[4,16,128], index: 7, kind: output, shape index: {}]
  %s8 = sld [smem:[#allocation0]]
  $region88: #{tpu_custom_call.1} parent=0
    _
  %s10 = ssub.s32 1, %s8
  %s11 = scalar_select 0, %s10, %s8
  $region1: #{tpu_custom_call.1} parent=0
    #allocation3 [shape = 'u8[32768]{0}', space=vmem, size = 0x8000, scoped, tag = 'input window, operand 0']
    #allocation4 [shape = 's32[2]{0}', space=sflag, size = 0x8, scoped, tag = 'scoped memory for tpu_custom_call.1']
    #allocation5 [shape = 's32[2]{0}', space=sflag, size = 0x8, scoped, tag = 'scoped memory for tpu_custom_call.1']
    #allocation6 [shape = 'u8[196608]{0}', space=vmem, size = 0x30000, scoped, tag = 'input window, operand 2, single buffered']
    #allocation7 [shape = 's32[1]{0}', space=sflag, size = 0x4, scoped, tag = 'scoped memory for tpu_custom_call.1']
    #allocation8 [shape = 'u8[65536]{0}', space=vmem, size = 0x10000, scoped, tag = 'input window, operand 3, single buffered']
    #allocation9 [shape = 'u8[131072]{0}', space=vmem, size = 0x20000, scoped, tag = 'input window, operand 4, single buffered']
    #allocation10 [shape = 's32[1]{0}', space=sflag, size = 0x4, scoped, tag = 'scoped memory for tpu_custom_call.1']
    #allocation11 [shape = 'u8[131072]{0}', space=vmem, size = 0x20000, scoped, tag = 'input window, operand 5, single buffered']
    #allocation12 [shape = 'u8[32768]{0}', space=vmem, size = 0x8000, scoped, tag = 'output window, operand 0']
    %12 = vsyncpa [#allocation4], 0
    %s13 = scalar_lea.sflag [#allocation4], 1
    %14 = vsyncpa %s13, 0
    %15 = vsyncpa [#allocation7], 0
    %16 = vsyncpa [#allocation10], 0
    %17 = vsyncpa [#allocation5], 0
    %s18 = scalar_lea.sflag [#allocation5], 1
    %19 = vsyncpa %s18, 0
    loop: start=0, step=1, limit=4
    $region2: #{tpu_custom_call.1} parent=1 // loop_pre_header
      _
    $region3: #{tpu_custom_call.1} parent=1 // loop_header
      %s21 = sphi 0, %s25
      %p22 = scmp.ge.s32.totalorder %s21, 4
      %s31 = sphi 0, %s33
      %s34 = sphi 0, %s31
      %s35 = sphi 0, %s34
      %s51 = sphi 0, %s35
      %s55 = sphi 0, %s55
      %s57 = sphi 0, %s55
      %s58 = sphi 0, %s57
      %s72 = sphi 0, %s58
      %s76 = sphi 0, %s76
      %s78 = sphi 0, %s76
      %s79 = sphi 0, %s78
      %s93 = sphi 0, %s79
      %s97 = sphi 0, %s97
      %s99 = sphi 0, %s97
      %s100 = sphi 0, %s99
      %s114 = sphi 0, %s100
      %s118 = sphi 0, %s118
      %s120 = sphi 0, %s118
      %s121 = sphi 0, %s120
      %s135 = sphi 0, %s121
      %s139 = sphi 0, %s139
      %s141 = sphi 0, %s139
      %s142 = sphi 0, %s141
      %s156 = sphi 0, %s142
      %s160 = sphi 0, %s160
      %s162 = sphi 0, %s160
      %s163 = sphi 0, %s162
      %s177 = sphi 0, %s163
      %s183 = sphi 0, %s185
      %s186 = sphi 0, %s183
      %s187 = sphi 0, %s186
      %s203 = sphi 0, %s187
    $region4: #{tpu_custom_call.1} parent=1 // loop_header_branch
      %24 = sbr.rel (%p22) target = $region8
    $region5: #{tpu_custom_call.1} parent=1 // loop_body
      %s26 = ssub.s32 %s21, 1
      %s27 = ssub.s32 %s21, 2
      %s28 = sadd.s32 %s21, 1
      %s29 = ssub.s32 %s21, %s28
      %p30 = scmp.eq.s32.totalorder %s29, 0
      %s32 = sadd.s32 %s31, 1
      %s33 = scalar_select %p30, %s31, %s32
      %p36 = pneg %p30
      %p37 = scmp.eq.s32.totalorder %s21, 1
      %p38 = por %p36, %p37
      %p39 = scmp.ne.s32.totalorder %s31, %s34
      %p40 = scmp.eq.s32.totalorder %s21, 0
      %p41 = por %p39, %p40
      %p42 = scmp.ne.s32.totalorder %s31, %s34
      %p43 = scmp.eq.s32.totalorder %s26, 1
      %p44 = por %p42, %p43
      %p45 = scmp.ne.s32.totalorder %s34, %s35
      %p46 = scmp.eq.s32.totalorder %s26, 0
      %p47 = por %p45, %p46
      %p48 = scmp.ne.s32.totalorder %s34, %s35
      %p49 = scmp.eq.s32.totalorder %s27, 1
      %p50 = por %p48, %p49
      %p52 = scmp.ne.s32.totalorder %s35, %s51
      %p53 = scmp.eq.s32.totalorder %s27, 0
      %p54 = por %p52, %p53
      %s56 = sadd.s32 %s55, 1
      %p59 = scmp.eq.s32.totalorder %s21, 1
      %p60 = scmp.ne.s32.totalorder %s55, %s57
      %p61 = scmp.eq.s32.totalorder %s21, 0
      %p62 = por %p60, %p61
      %p63 = scmp.ne.s32.totalorder %s55, %s57
      %p64 = scmp.eq.s32.totalorder %s26, 1
      %p65 = por %p63, %p64
      %p66 = scmp.ne.s32.totalorder %s57, %s58
      %p67 = scmp.eq.s32.totalorder %s26, 0
      %p68 = por %p66, %p67
      %p69 = scmp.ne.s32.totalorder %s57, %s58
      %p70 = scmp.eq.s32.totalorder %s27, 1
      %p71 = por %p69, %p70
      %p73 = scmp.ne.s32.totalorder %s58, %s72
      %p74 = scmp.eq.s32.totalorder %s27, 0
      %p75 = por %p73, %p74
      %s77 = sadd.s32 %s76, 1
      %p80 = scmp.eq.s32.totalorder %s21, 1
      %p81 = scmp.ne.s32.totalorder %s76, %s78
      %p82 = scmp.eq.s32.totalorder %s21, 0
      %p83 = por %p81, %p82
      %p84 = scmp.ne.s32.totalorder %s76, %s78
      %p85 = scmp.eq.s32.totalorder %s26, 1
      %p86 = por %p84, %p85
      %p87 = scmp.ne.s32.totalorder %s78, %s79
      %p88 = scmp.eq.s32.totalorder %s26, 0
      %p89 = por %p87, %p88
      %p90 = scmp.ne.s32.totalorder %s78, %s79
      %p91 = scmp.eq.s32.totalorder %s27, 1
      %p92 = por %p90, %p91
      %p94 = scmp.ne.s32.totalorder %s79, %s93
      %p95 = scmp.eq.s32.totalorder %s27, 0
      %p96 = por %p94, %p95
      %s98 = sadd.s32 %s97, 1
      %p101 = scmp.eq.s32.totalorder %s21, 1
      %p102 = scmp.ne.s32.totalorder %s97, %s99
      %p103 = scmp.eq.s32.totalorder %s21, 0
      %p104 = por %p102, %p103
      %p105 = scmp.ne.s32.totalorder %s97, %s99
      %p106 = scmp.eq.s32.totalorder %s26, 1
      %p107 = por %p105, %p106
      %p108 = scmp.ne.s32.totalorder %s99, %s100
      %p109 = scmp.eq.s32.totalorder %s26, 0
      %p110 = por %p108, %p109
      %p111 = scmp.ne.s32.totalorder %s99, %s100
      %p112 = scmp.eq.s32.totalorder %s27, 1
      %p113 = por %p111, %p112
      %p115 = scmp.ne.s32.totalorder %s100, %s114
      %p116 = scmp.eq.s32.totalorder %s27, 0
      %p117 = por %p115, %p116
      %s119 = sadd.s32 %s118, 1
      %p122 = scmp.eq.s32.totalorder %s21, 1
      %p123 = scmp.ne.s32.totalorder %s118, %s120
      %p124 = scmp.eq.s32.totalorder %s21, 0
      %p125 = por %p123, %p124
      %p126 = scmp.ne.s32.totalorder %s118, %s120
      %p127 = scmp.eq.s32.totalorder %s26, 1
      %p128 = por %p126, %p127
      %p129 = scmp.ne.s32.totalorder %s120, %s121
      %p130 = scmp.eq.s32.totalorder %s26, 0
      %p131 = por %p129, %p130
      %p132 = scmp.ne.s32.totalorder %s120, %s121
      %p133 = scmp.eq.s32.totalorder %s27, 1
      %p134 = por %p132, %p133
      %p136 = scmp.ne.s32.totalorder %s121, %s135
      %p137 = scmp.eq.s32.totalorder %s27, 0
      %p138 = por %p136, %p137
      %s140 = sadd.s32 %s139, 1
      %p143 = scmp.eq.s32.totalorder %s21, 1
      %p144 = scmp.ne.s32.totalorder %s139, %s141
      %p145 = scmp.eq.s32.totalorder %s21, 0
      %p146 = por %p144, %p145
      %p147 = scmp.ne.s32.totalorder %s139, %s141
      %p148 = scmp.eq.s32.totalorder %s26, 1
      %p149 = por %p147, %p148
      %p150 = scmp.ne.s32.totalorder %s141, %s142
      %p151 = scmp.eq.s32.totalorder %s26, 0
      %p152 = por %p150, %p151
      %p153 = scmp.ne.s32.totalorder %s141, %s142
      %p154 = scmp.eq.s32.totalorder %s27, 1
      %p155 = por %p153, %p154
      %p157 = scmp.ne.s32.totalorder %s142, %s156
      %p158 = scmp.eq.s32.totalorder %s27, 0
      %p159 = por %p157, %p158
      %s161 = sadd.s32 %s160, 1
      %p164 = scmp.eq.s32.totalorder %s21, 1
      %p165 = scmp.ne.s32.totalorder %s160, %s162
      %p166 = scmp.eq.s32.totalorder %s21, 0
      %p167 = por %p165, %p166
      %p168 = scmp.ne.s32.totalorder %s160, %s162
      %p169 = scmp.eq.s32.totalorder %s26, 1
      %p170 = por %p168, %p169
      %p171 = scmp.ne.s32.totalorder %s162, %s163
      %p172 = scmp.eq.s32.totalorder %s26, 0
      %p173 = por %p171, %p172
      %p174 = scmp.ne.s32.totalorder %s162, %s163
      %p175 = scmp.eq.s32.totalorder %s27, 1
      %p176 = por %p174, %p175
      %p178 = scmp.ne.s32.totalorder %s163, %s177
      %p179 = scmp.eq.s32.totalorder %s27, 0
      %p180 = por %p178, %p179
      %s181 = ssub.s32 %s21, %s28
      %p182 = scmp.eq.s32.totalorder %s181, 0
      %s184 = sadd.s32 %s183, 1
      %s185 = scalar_select %p182, %s183, %s184
      %p188 = pneg %p182
      %p189 = scmp.eq.s32.totalorder %s21, 1
      %p190 = por %p188, %p189
      %p191 = scmp.ne.s32.totalorder %s183, %s186
      %p192 = scmp.eq.s32.totalorder %s21, 0
      %p193 = por %p191, %p192
      %p194 = scmp.ne.s32.totalorder %s183, %s186
      %p195 = scmp.eq.s32.totalorder %s26, 1
      %p196 = por %p194, %p195
      %p197 = scmp.ne.s32.totalorder %s186, %s187
      %p198 = scmp.eq.s32.totalorder %s26, 0
      %p199 = por %p197, %p198
      %p200 = scmp.ne.s32.totalorder %s186, %s187
      %p201 = scmp.eq.s32.totalorder %s27, 1
      %p202 = por %p200, %p201
      %p204 = scmp.ne.s32.totalorder %s187, %s203
      %p205 = scmp.eq.s32.totalorder %s27, 0
      %p206 = por %p204, %p205
      %p207 = scmp.le.s32.totalorder 1, %s21
      %p208 = scmp.lt.s32.totalorder %s21, 3
      %p209 = pnand %p207, %p208
      %p210 = pneg %p209
      // Predicated region
      $region9: #{tpu_custom_call.1} parent=5 // pred_check
        _
      $region10: #{tpu_custom_call.1} parent=5 // pred_check_branch
        %212 = sbr.rel (%p209) target = $region12
      $region11: #{tpu_custom_call.1} parent=5 // pred_region
        %s213 = ssub.s32 %s21, 1
        // Predicated region
        $region13: #{tpu_custom_call.1} parent=11 // pred_check
          %p214 = pneg %p68
        $region14: #{tpu_custom_call.1} parent=11 // pred_check_branch
          %216 = sbr.rel (%p214) target = $region16
        $region15: #{tpu_custom_call.1} parent=11 // pred_region
          _
        $region16: #{tpu_custom_call.1} parent=11 // pred_fallthru
          _
        // Predicated region
        $region17: #{tpu_custom_call.1} parent=11 // pred_check
          %p217 = pneg %p89
        $region18: #{tpu_custom_call.1} parent=11 // pred_check_branch
          %219 = sbr.rel (%p217) target = $region20
        $region19: #{tpu_custom_call.1} parent=11 // pred_region
          %221 = vsyncadd [#allocation7], 0
          %s222 = sshll.u32 %s2, 4
          %s223 = int_to_ptr.hbm [resolvable:$true] %s222
          %s224 = sshll.u32 [#allocation6], 4
          %s225 = int_to_ptr.vmem [resolvable:$true] %s224
          %230 = dma.hbm_to_vmem [thread:$0]  %s223, 6144, %s225, [#allocation7], 192, 192, 12
        $region20: #{tpu_custom_call.1} parent=11 // pred_fallthru
          _
        // Predicated region
        $region21: #{tpu_custom_call.1} parent=11 // pred_check
          %p231 = pneg %p110
        $region22: #{tpu_custom_call.1} parent=11 // pred_check_branch
          %233 = sbr.rel (%p231) target = $region24
        $region23: #{tpu_custom_call.1} parent=11 // pred_region
          %235 = vsyncadd [#allocation7], 0
          %s236 = sshll.u32 %s3, 4
          %s237 = int_to_ptr.hbm [resolvable:$true] %s236
          %s238 = sshll.u32 [#allocation8], 4
          %s239 = int_to_ptr.vmem [resolvable:$true] %s238
          %244 = dma.hbm_to_vmem [thread:$0]  %s237, 2048, %s239, [#allocation7], 64, 64, 4
        $region24: #{tpu_custom_call.1} parent=11 // pred_fallthru
          _
        // Predicated region
        $region25: #{tpu_custom_call.1} parent=11 // pred_check
          %p245 = pneg %p131
        $region26: #{tpu_custom_call.1} parent=11 // pred_check_branch
          %247 = sbr.rel (%p245) target = $region28
        $region27: #{tpu_custom_call.1} parent=11 // pred_region
          %249 = vsyncadd [#allocation10], 0
          %s250 = sshll.u32 %s4, 4
          %s251 = int_to_ptr.hbm [resolvable:$true] %s250
          %s252 = sshll.u32 [#allocation9], 4
          %s253 = int_to_ptr.vmem [resolvable:$true] %s252
          %258 = dma.hbm_to_vmem [thread:$0]  %s251, 4096, %s253, [#allocation10], 128, 128, 8
        $region28: #{tpu_custom_call.1} parent=11 // pred_fallthru
          _
        // Predicated region
        $region29: #{tpu_custom_call.1} parent=11 // pred_check
          %p259 = pneg %p152
        $region30: #{tpu_custom_call.1} parent=11 // pred_check_branch
          %261 = sbr.rel (%p259) target = $region32
        $region31: #{tpu_custom_call.1} parent=11 // pred_region
          %263 = vsyncadd [#allocation10], 0
          %s264 = sshll.u32 %s5, 4
          %s265 = int_to_ptr.hbm [resolvable:$true] %s264
          %s266 = sshll.u32 [#allocation11], 4
          %s267 = int_to_ptr.vmem [resolvable:$true] %s266
          %272 = dma.hbm_to_vmem [thread:$0]  %s265, 4096, %s267, [#allocation10], 64, 64, 4
        $region32: #{tpu_custom_call.1} parent=11 // pred_fallthru
          _
        // Predicated region
        $region33: #{tpu_custom_call.1} parent=11 // pred_check
          %p273 = pneg %p173
        $region34: #{tpu_custom_call.1} parent=11 // pred_check_branch
          %275 = sbr.rel (%p273) target = $region36
        $region35: #{tpu_custom_call.1} parent=11 // pred_region
          _
        $region36: #{tpu_custom_call.1} parent=11 // pred_fallthru
          _
      $region12: #{tpu_custom_call.1} parent=5 // pred_fallthru
        _
      %p276 = scmp.lt.s32.totalorder %s21, 2
      // Predicated region
      $region37: #{tpu_custom_call.1} parent=5 // pred_check
        %p277 = pneg %p276
      $region38: #{tpu_custom_call.1} parent=5 // pred_check_branch
        %279 = sbr.rel (%p277) target = $region40
      $region39: #{tpu_custom_call.1} parent=5 // pred_region
        // Predicated region
        $region41: #{tpu_custom_call.1} parent=39 // pred_check
          %p280 = pneg %p41
        $region42: #{tpu_custom_call.1} parent=39 // pred_check_branch
          %282 = sbr.rel (%p280) target = $region44
        $region43: #{tpu_custom_call.1} parent=39 // pred_region
          %s283 = sand.u32 %s31, 1
          %s284 = scalar_lea.sflag [#allocation4], %s283
          %s285 = sand.u32 %s31, 1
          %s286 = smul.addr %s285, 32
          %s287 = scalar_lea.vmem [#allocation3], %s286
          %s288 = smul.u32 2, %s21
          %290 = vsyncadd %s284, 0
          %s291 = smul.addr %s288, 2
          %s292 = smul.addr %s291, 8
          %s293 = scalar_lea.hbm %s0, %s292
          %s294 = sshll.u32 %s293, 4
          %s295 = int_to_ptr.hbm [resolvable:$true] %s294
          %s296 = sshll.u32 %s287, 4
          %s297 = int_to_ptr.vmem [resolvable:$true] %s296
          %302 = dma.hbm_to_vmem [thread:$0]  %s295, 512, %s297, %s284, 128, 128, 8
        $region44: #{tpu_custom_call.1} parent=39 // pred_fallthru
          _
      $region40: #{tpu_custom_call.1} parent=5 // pred_fallthru
        _
      %p303 = scmp.le.s32.totalorder 1, %s21
      %p304 = scmp.lt.s32.totalorder %s21, 3
      %p305 = pnand %p303, %p304
      %p306 = pneg %p305
      // Predicated region
      $region45: #{tpu_custom_call.1} parent=5 // pred_check
        _
      $region46: #{tpu_custom_call.1} parent=5 // pred_check_branch
        %308 = sbr.rel (%p305) target = $region48
      $region47: #{tpu_custom_call.1} parent=5 // pred_region
        %s309 = ssub.s32 %s21, 1
        %s310 = sand.u32 %s34, 1
        %s311 = scalar_lea.sflag [#allocation4], %s310
        %s312 = sand.u32 %s34, 1
        %s313 = smul.addr %s312, 32
        %s314 = scalar_lea.vmem [#allocation3], %s313
        // Predicated region
        $region49: #{tpu_custom_call.1} parent=47 // pred_check
          %p315 = pneg %p47
        $region50: #{tpu_custom_call.1} parent=47 // pred_check_branch
          %317 = sbr.rel (%p315) target = $region52
        $region51: #{tpu_custom_call.1} parent=47 // pred_region
          %319 = dma.done %s311, 512
        $region52: #{tpu_custom_call.1} parent=47 // pred_fallthru
          _
        // Predicated region
        $region53: #{tpu_custom_call.1} parent=47 // pred_check
          %p320 = pneg %p89
        $region54: #{tpu_custom_call.1} parent=47 // pred_check_branch
          %322 = sbr.rel (%p320) target = $region56
        $region55: #{tpu_custom_call.1} parent=47 // pred_region
          %324 = dma.done [#allocation7], 6144
        $region56: #{tpu_custom_call.1} parent=47 // pred_fallthru
          _
        // Predicated region
        $region57: #{tpu_custom_call.1} parent=47 // pred_check
          %p325 = pneg %p110
        $region58: #{tpu_custom_call.1} parent=47 // pred_check_branch
          %327 = sbr.rel (%p325) target = $region60
        $region59: #{tpu_custom_call.1} parent=47 // pred_region
          %329 = dma.done [#allocation7], 2048
        $region60: #{tpu_custom_call.1} parent=47 // pred_fallthru
          _
        // Predicated region
        $region61: #{tpu_custom_call.1} parent=47 // pred_check
          %p330 = pneg %p131
        $region62: #{tpu_custom_call.1} parent=47 // pred_check_branch
          %332 = sbr.rel (%p330) target = $region64
        $region63: #{tpu_custom_call.1} parent=47 // pred_region
          %334 = dma.done [#allocation10], 4096
        $region64: #{tpu_custom_call.1} parent=47 // pred_fallthru
          _
        // Predicated region
        $region65: #{tpu_custom_call.1} parent=47 // pred_check
          %p335 = pneg %p152
        $region66: #{tpu_custom_call.1} parent=47 // pred_check_branch
          %337 = sbr.rel (%p335) target = $region68
        $region67: #{tpu_custom_call.1} parent=47 // pred_region
          %339 = dma.done [#allocation10], 4096
        $region68: #{tpu_custom_call.1} parent=47 // pred_fallthru
          _
        %s340 = sand.u32 %s34, 1
        %s341 = scalar_lea.sflag [#allocation4], %s340
        %s342 = sand.u32 %s34, 1
        %s343 = smul.addr %s342, 32
        %s344 = scalar_lea.vmem [#allocation3], %s343
        %p345 = pneg %p47
        %p346 = pneg %p44
        %p347 = pneg %p68
        %p348 = pneg %p65
        %p349 = pneg %p89
        %p350 = pneg %p86
        %p351 = pneg %p110
        %p352 = pneg %p107
        %p353 = pneg %p131
        %p354 = pneg %p128
        %p355 = pneg %p152
        %p356 = pneg %p149
        %p357 = pneg %p173
        %p358 = pneg %p170
        %p359 = pneg %p199
        %p360 = pneg %p196
        %s361 = sand.u32 %s186, 1
        %s362 = scalar_lea.sflag [#allocation5], %s361
        %s363 = sand.u32 %s186, 1
        %s364 = smul.addr %s363, 32
        %s365 = scalar_lea.vmem [#allocation12], %s364
        %s366 = smul.u32 2, %s26
        %s367 = smul.u32 2, %s26
        %v369 = vld [vmem:[%s314] sm:$0xff]
        %v370 = vld [vmem:[%s314 + $0x8] sm:$0xff]
        %v371 = vld [vmem:[%s314 + $0x10] sm:$0xff]
        %v372 = vld [vmem:[%s314 + $0x18] sm:$0xff]
        %v373 = vld [vmem:[%s1] sm:$0xff]
        %v374 = vld [vmem:[%s1 + $0x8] sm:$0xff]
        %v375 = vadd.f32 %v369, %v373
        %v376 = vadd.f32 %v370, %v374
        %v377 = vadd.f32 %v371, %v373
        %v378 = vadd.f32 %v372, %v374
        loop: start=0, step=1, limit=2
        $region69: #{tpu_custom_call.1} parent=47 // loop_pre_header
          _
        $region70: #{tpu_custom_call.1} parent=47 // loop_header
          %s380 = sphi 0, %s384
          %p381 = scmp.ge.s32.totalorder %s380, 2
          %v385 = vphi %v375, %v1927
          %v386 = vphi %v376, %v1928
          %v387 = vphi %v377, %v1929
          %v388 = vphi %v378, %v1930
        $region71: #{tpu_custom_call.1} parent=47 // loop_header_branch
          %383 = sbr.rel (%p381) target = $region75
        $region72: #{tpu_custom_call.1} parent=47 // loop_body
          %s389 = smul.u32 %s380, 48
          %s390 = smul.addr %s389, 4
          %s391 = scalar_lea.vmem [#allocation6], %s390
          %v392 = vld [vmem:[%s391] sm:$0xff]
          %v393 = vld [vmem:[%s391 + $0x8] sm:$0xf]
          %v394 = vld [vmem:[%s391 + $0xc] sm:$0xff]
          %v395 = vld [vmem:[%s391 + $0x14] sm:$0xf]
          %v396 = vld [vmem:[%s391 + $0x18] sm:$0xff]
          %v397 = vld [vmem:[%s391 + $0x20] sm:$0xf]
          %v398 = vld [vmem:[%s391 + $0x24] sm:$0xff]
          %v399 = vld [vmem:[%s391 + $0x2c] sm:$0xf]
          %v400 = vld [vmem:[%s391 + $0x30] sm:$0xff]
          %v401 = vld [vmem:[%s391 + $0x38] sm:$0xf]
          %v402 = vld [vmem:[%s391 + $0x3c] sm:$0xff]
          %v403 = vld [vmem:[%s391 + $0x44] sm:$0xf]
          %v404 = vld [vmem:[%s391 + $0x48] sm:$0xff]
          %v405 = vld [vmem:[%s391 + $0x50] sm:$0xf]
          %v406 = vld [vmem:[%s391 + $0x54] sm:$0xff]
          %v407 = vld [vmem:[%s391 + $0x5c] sm:$0xf]
          %v408 = vld [vmem:[%s391 + $0x60] sm:$0xff]
          %v409 = vld [vmem:[%s391 + $0x68] sm:$0xf]
          %v410 = vld [vmem:[%s391 + $0x6c] sm:$0xff]
          %v411 = vld [vmem:[%s391 + $0x74] sm:$0xf]
          %v412 = vld [vmem:[%s391 + $0x78] sm:$0xff]
          %v413 = vld [vmem:[%s391 + $0x80] sm:$0xf]
          %v414 = vld [vmem:[%s391 + $0x84] sm:$0xff]
          %v415 = vld [vmem:[%s391 + $0x8c] sm:$0xf]
          %v416 = vld [vmem:[%s391 + $0x90] sm:$0xff]
          %v417 = vld [vmem:[%s391 + $0x98] sm:$0xf]
          %v418 = vld [vmem:[%s391 + $0x9c] sm:$0xff]
          %v419 = vld [vmem:[%s391 + $0xa4] sm:$0xf]
          %v420 = vld [vmem:[%s391 + $0xa8] sm:$0xff]
          %v421 = vld [vmem:[%s391 + $0xb0] sm:$0xf]
          %v422 = vld [vmem:[%s391 + $0xb4] sm:$0xff]
          %v423 = vld [vmem:[%s391 + $0xbc] sm:$0xf]
          %s424 = smul.u32 %s380, 16
          %s425 = smul.addr %s424, 4
          %s426 = scalar_lea.vmem [#allocation8], %s425
          %v427 = vld [vmem:[%s426] sm:$0xf]
          %v428 = vld [vmem:[%s426 + $0x4] sm:$0xf]
          %v429 = vld [vmem:[%s426 + $0x8] sm:$0xf]
          %v430 = vld [vmem:[%s426 + $0xc] sm:$0xf]
          %v431 = vld [vmem:[%s426 + $0x10] sm:$0xf]
          %v432 = vld [vmem:[%s426 + $0x14] sm:$0xf]
          %v433 = vld [vmem:[%s426 + $0x18] sm:$0xf]
          %v434 = vld [vmem:[%s426 + $0x1c] sm:$0xf]
          %v435 = vld [vmem:[%s426 + $0x20] sm:$0xf]
          %v436 = vld [vmem:[%s426 + $0x24] sm:$0xf]
          %v437 = vld [vmem:[%s426 + $0x28] sm:$0xf]
          %v438 = vld [vmem:[%s426 + $0x2c] sm:$0xf]
          %v439 = vld [vmem:[%s426 + $0x30] sm:$0xf]
          %v440 = vld [vmem:[%s426 + $0x34] sm:$0xf]
          %v441 = vld [vmem:[%s426 + $0x38] sm:$0xf]
          %v442 = vld [vmem:[%s426 + $0x3c] sm:$0xf]
          %s443 = smul.u32 %s380, 32
          %s444 = smul.addr %s443, 4
          %s445 = scalar_lea.vmem [#allocation9], %s444
          %v446 = vld [vmem:[%s445] sm:$0xff]
          %v447 = vld [vmem:[%s445 + $0x8] sm:$0xff]
          %v448 = vld [vmem:[%s445 + $0x10] sm:$0xff]
          %v449 = vld [vmem:[%s445 + $0x18] sm:$0xff]
          %v450 = vld [vmem:[%s445 + $0x20] sm:$0xff]
          %v451 = vld [vmem:[%s445 + $0x28] sm:$0xff]
          %v452 = vld [vmem:[%s445 + $0x30] sm:$0xff]
          %v453 = vld [vmem:[%s445 + $0x38] sm:$0xff]
          %v454 = vld [vmem:[%s445 + $0x40] sm:$0xff]
          %v455 = vld [vmem:[%s445 + $0x48] sm:$0xff]
          %v456 = vld [vmem:[%s445 + $0x50] sm:$0xff]
          %v457 = vld [vmem:[%s445 + $0x58] sm:$0xff]
          %v458 = vld [vmem:[%s445 + $0x60] sm:$0xff]
          %v459 = vld [vmem:[%s445 + $0x68] sm:$0xff]
          %v460 = vld [vmem:[%s445 + $0x70] sm:$0xff]
          %v461 = vld [vmem:[%s445 + $0x78] sm:$0xff]
          %s462 = smul.addr %s443, 4
          %s463 = scalar_lea.vmem [#allocation11], %s462
          %v464 = vld [vmem:[%s463] sm:$0xf]
          %v465 = vld [vmem:[%s463 + $0x4] sm:$0xf]
          %v466 = vld [vmem:[%s463 + $0x8] sm:$0xf]
          %v467 = vld [vmem:[%s463 + $0xc] sm:$0xf]
          %v468 = vld [vmem:[%s463 + $0x10] sm:$0xf]
          %v469 = vld [vmem:[%s463 + $0x14] sm:$0xf]
          %v470 = vld [vmem:[%s463 + $0x18] sm:$0xf]
          %v471 = vld [vmem:[%s463 + $0x1c] sm:$0xf]
          %v472 = vld [vmem:[%s463 + $0x20] sm:$0xf]
          %v473 = vld [vmem:[%s463 + $0x24] sm:$0xf]
          %v474 = vld [vmem:[%s463 + $0x28] sm:$0xf]
          %v475 = vld [vmem:[%s463 + $0x2c] sm:$0xf]
          %v476 = vld [vmem:[%s463 + $0x30] sm:$0xf]
          %v477 = vld [vmem:[%s463 + $0x34] sm:$0xf]
          %v478 = vld [vmem:[%s463 + $0x38] sm:$0xf]
          %v479 = vld [vmem:[%s463 + $0x3c] sm:$0xf]
          %v480 = vld [vmem:[%s463 + $0x40] sm:$0xf]
          %v481 = vld [vmem:[%s463 + $0x44] sm:$0xf]
          %v482 = vld [vmem:[%s463 + $0x48] sm:$0xf]
          %v483 = vld [vmem:[%s463 + $0x4c] sm:$0xf]
          %v484 = vld [vmem:[%s463 + $0x50] sm:$0xf]
          %v485 = vld [vmem:[%s463 + $0x54] sm:$0xf]
          %v486 = vld [vmem:[%s463 + $0x58] sm:$0xf]
          %v487 = vld [vmem:[%s463 + $0x5c] sm:$0xf]
          %v488 = vld [vmem:[%s463 + $0x60] sm:$0xf]
          %v489 = vld [vmem:[%s463 + $0x64] sm:$0xf]
          %v490 = vld [vmem:[%s463 + $0x68] sm:$0xf]
          %v491 = vld [vmem:[%s463 + $0x6c] sm:$0xf]
          %v492 = vld [vmem:[%s463 + $0x70] sm:$0xf]
          %v493 = vld [vmem:[%s463 + $0x74] sm:$0xf]
          %v494 = vld [vmem:[%s463 + $0x78] sm:$0xf]
          %v495 = vld [vmem:[%s463 + $0x7c] sm:$0xf]
          %s496 = smul.u32 %s380, 2
          %s497 = smul.addr %s496, 8
          %s498 = scalar_lea.vmem %s6, %s497
          %v499 = vld [vmem:[%s498] sm:$0x3f]
          %v500 = vld [vmem:[%s498 + $0x8] sm:$0x3f]
          %v501 = vpack.c.bf16 %v386, %v385
          %v502 = vpack.c.bf16 %v388, %v387
          %v535 = vunpack.c.l.b16 %v392
          %v536 = vunpack.c.h.b16 %v392
          %v537 = vunpack.c.l.b16 %v393
          %v538 = vunpack.c.l.b16 %v394
          %v539 = vunpack.c.h.b16 %v394
          %v540 = vunpack.c.l.b16 %v395
          %v541 = vunpack.c.l.b16 %v396
          %v542 = vunpack.c.h.b16 %v396
          %v543 = vunpack.c.l.b16 %v397
          %v544 = vunpack.c.l.b16 %v398
          %v545 = vunpack.c.h.b16 %v398
          %v546 = vunpack.c.l.b16 %v399
          %v547 = vunpack.c.l.b16 %v400
          %v548 = vunpack.c.h.b16 %v400
          %v549 = vunpack.c.l.b16 %v401
          %v550 = vunpack.c.l.b16 %v402
          %v551 = vunpack.c.h.b16 %v402
          %v552 = vunpack.c.l.b16 %v403
          %v553 = vunpack.c.l.b16 %v404
          %v554 = vunpack.c.h.b16 %v404
          %v555 = vunpack.c.l.b16 %v405
          %v556 = vunpack.c.l.b16 %v406
          %v557 = vunpack.c.h.b16 %v406
          %v558 = vunpack.c.l.b16 %v407
          %v559 = vunpack.c.l.b16 %v408
          %v560 = vunpack.c.h.b16 %v408
          %v561 = vunpack.c.l.b16 %v409
          %v562 = vunpack.c.l.b16 %v410
          %v563 = vunpack.c.h.b16 %v410
          %v564 = vunpack.c.l.b16 %v411
          %v565 = vunpack.c.l.b16 %v412
          %v566 = vunpack.c.h.b16 %v412
          %v567 = vunpack.c.l.b16 %v413
          %v568 = vunpack.c.l.b16 %v414
          %v569 = vunpack.c.h.b16 %v414
          %v570 = vunpack.c.l.b16 %v415
          %v571 = vunpack.c.l.b16 %v416
          %v572 = vunpack.c.h.b16 %v416
          %v573 = vunpack.c.l.b16 %v417
          %v574 = vunpack.c.l.b16 %v418
          %v575 = vunpack.c.h.b16 %v418
          %v576 = vunpack.c.l.b16 %v419
          %v577 = vunpack.c.l.b16 %v420
          %v578 = vunpack.c.h.b16 %v420
          %v579 = vunpack.c.l.b16 %v421
          %v580 = vunpack.c.l.b16 %v422
          %v581 = vunpack.c.h.b16 %v422
          %v582 = vunpack.c.l.b16 %v423
          %v583 = vpack.c.b16 %v538, %v535
          %v584 = vpack.c.b16 %v539, %v536
          %v585 = vpack.c.b16 %v540, %v537
          %v586 = vpack.c.b16 %v544, %v541
          %v587 = vpack.c.b16 %v545, %v542
          %v588 = vpack.c.b16 %v546, %v543
          %v589 = vpack.c.b16 %v550, %v547
          %v590 = vpack.c.b16 %v551, %v548
          %v591 = vpack.c.b16 %v552, %v549
          %v592 = vpack.c.b16 %v556, %v553
          %v593 = vpack.c.b16 %v557, %v554
          %v594 = vpack.c.b16 %v558, %v555
          %v595 = vpack.c.b16 %v562, %v559
          %v596 = vpack.c.b16 %v563, %v560
          %v597 = vpack.c.b16 %v564, %v561
          %v598 = vpack.c.b16 %v568, %v565
          %v599 = vpack.c.b16 %v569, %v566
          %v600 = vpack.c.b16 %v570, %v567
          %v601 = vpack.c.b16 %v574, %v571
          %v602 = vpack.c.b16 %v575, %v572
          %v603 = vpack.c.b16 %v576, %v573
          %v604 = vpack.c.b16 %v580, %v577
          %v605 = vpack.c.b16 %v581, %v578
          %v606 = vpack.c.b16 %v582, %v579
          %631 = vmatpush.bf16.msra.mxu0 %v604
          %632 = vmatpush.bf16.msra.mxu0 %v601
          %633 = vmatpush.bf16.msra.mxu0 %v598
          %634 = vmatpush.bf16.msra.mxu0 %v595
          %635 = vmatpush.bf16.msra.mxu0 %v592
          %636 = vmatpush.bf16.msra.mxu0 %v589
          %637 = vmatpush.bf16.msra.mxu0 %v586
          %638 = vmatpush.bf16.msra.mxu0 %v583
          %639 = vmatmul.bf16.gmra.mxu0 %v501
          %v640 = vpop.f32.mrf.mxu0
          %v641 = vadd.f32 0.0, %v640
          %v642 = vpop.f32.mrf.mxu0
          %v643 = vadd.f32 0.0, %v642
          %644 = vmatmul.bf16.gmra.mxu0 %v502
          %v645 = vpop.f32.mrf.mxu0
          %v646 = vadd.f32 0.0, %v645
          %v647 = vpop.f32.mrf.mxu0
          %v648 = vadd.f32 0.0, %v647
          %649 = vdwg.mxu0
          %650 = vmatpush.bf16.msra.mxu0 %v605
          %651 = vmatpush.bf16.msra.mxu0 %v602
          %652 = vmatpush.bf16.msra.mxu0 %v599
          %653 = vmatpush.bf16.msra.mxu0 %v596
          %654 = vmatpush.bf16.msra.mxu0 %v593
          %655 = vmatpush.bf16.msra.mxu0 %v590
          %656 = vmatpush.bf16.msra.mxu0 %v587
          %657 = vmatpush.bf16.msra.mxu0 %v584
          %658 = vmatmul.bf16.gmra.mxu0 %v501
          %v659 = vpop.f32.mrf.mxu0
          %v660 = vadd.f32 0.0, %v659
          %v661 = vpop.f32.mrf.mxu0
          %v662 = vadd.f32 0.0, %v661
          %663 = vmatmul.bf16.gmra.mxu0 %v502
          %v664 = vpop.f32.mrf.mxu0
          %v665 = vadd.f32 0.0, %v664
          %v666 = vpop.f32.mrf.mxu0
          %v667 = vadd.f32 0.0, %v666
          %668 = vdwg.mxu0
          %669 = vmatpush.bf16.msra.mxu0 %v606
          %670 = vmatpush.bf16.msra.mxu0 %v603
          %671 = vmatpush.bf16.msra.mxu0 %v600
          %672 = vmatpush.bf16.msra.mxu0 %v597
          %673 = vmatpush.bf16.msra.mxu0 %v594
          %674 = vmatpush.bf16.msra.mxu0 %v591
          %675 = vmatpush.bf16.msra.mxu0 %v588
          %676 = vmatpush.bf16.msra.mxu0 %v585
          %677 = vmatmul.bf16.gmra.mxu0 %v501
          %v678 = vpop.f32.mrf.mxu0
          %v679 = vadd.f32 0.0, %v678
          %v680 = vpop.f32.mrf.mxu0
          %v681 = vadd.f32 0.0, %v680
          %682 = vmatmul.bf16.gmra.mxu0 %v502
          %v683 = vpop.f32.mrf.mxu0
          %v684 = vadd.f32 0.0, %v683
          %v685 = vpop.f32.mrf.mxu0
          %v686 = vadd.f32 0.0, %v685
          %687 = vdwg.mxu0
          %v688 = vpack.c.bf16 %v641, %v641
          %v689 = vpack.c.bf16 %v643, %v643
          %v690 = vpack.c.bf16 %v646, %v646
          %v691 = vpack.c.bf16 %v648, %v648
          %v692 = vpack.c.bf16 %v660, %v660
          %v693 = vpack.c.bf16 %v662, %v662
          %v694 = vpack.c.bf16 %v665, %v665
          %v695 = vpack.c.bf16 %v667, %v667
          %v696 = vpack.c.bf16 %v679, %v679
          %v697 = vpack.c.bf16 %v681, %v681
          %v698 = vpack.c.bf16 %v684, %v684
          %v699 = vpack.c.bf16 %v686, %v686
          %v702 = vunpack.c.l.b16 %v688
          %v703 = vunpack.c.l.b16 %v689
          %v704 = vpack.c.b16 %v703, %v702
          %v707 = vunpack.c.l.b16 %v692
          %v708 = vunpack.c.l.b16 %v693
          %v709 = vpack.c.b16 %v708, %v707
          %vm710 = vcmask 261120
          %v712 = vsel %vm710, %v704, 0
          %v715 = vsel %vm710, %v709, 0
          %717 = vmatpush.bf16.xpose.msra.mxu0 0
          %718 = vmatpush.bf16.xpose.msra.mxu0 0
          %719 = vmatpush.bf16.xpose.msra.mxu0 0
          %720 = vmatpush.bf16.xpose.msra.mxu0 0
          %721 = vmatpush.bf16.xpose.msra.mxu0 0
          %722 = vmatpush.bf16.xpose.msra.mxu0 0
          %723 = vmatpush.bf16.xpose.msra.mxu0 0
          %724 = vmatpush.bf16.xpose.msra.mxu0 %v715
          %725 = vmatmul.bf16.gmra.mxu0 %v712
          %v726 = vpop.f32.mrf.mxu0
          %v727 = vadd.f32 0.0, %v726
          %v728 = vpop.f32.mrf.mxu0
          %v729 = vadd.f32 0.0, %v728
          %730 = vdwg.mxu0
          %v733 = vunpack.c.l.b16 %v690
          %v734 = vunpack.c.l.b16 %v691
          %v735 = vpack.c.b16 %v734, %v733
          %v738 = vunpack.c.l.b16 %v694
          %v739 = vunpack.c.l.b16 %v695
          %v740 = vpack.c.b16 %v739, %v738
          %v742 = vsel %vm710, %v735, 0
          %v745 = vsel %vm710, %v740, 0
          %747 = vmatpush.bf16.xpose.msra.mxu0 0
          %748 = vmatpush.bf16.xpose.msra.mxu0 0
          %749 = vmatpush.bf16.xpose.msra.mxu0 0
          %750 = vmatpush.bf16.xpose.msra.mxu0 0
          %751 = vmatpush.bf16.xpose.msra.mxu0 0
          %752 = vmatpush.bf16.xpose.msra.mxu0 0
          %753 = vmatpush.bf16.xpose.msra.mxu0 0
          %754 = vmatpush.bf16.xpose.msra.mxu0 %v745
          %755 = vmatmul.bf16.gmra.mxu0 %v742
          %v756 = vpop.f32.mrf.mxu0
          %v757 = vadd.f32 0.0, %v756
          %v758 = vpop.f32.mrf.mxu0
          %v759 = vadd.f32 0.0, %v758
          %760 = vdwg.mxu0
          %vm761 = vcmask 130048
          %v762 = vsel %vm761, %v727, -inf
          %763 = vmax.xlane.f32.xlu0 %v762
          %v764 = vpop.xlane.xlu0 %763
          %v765 = vsel %vm761, %v729, -inf
          %766 = vmax.xlane.f32.xlu0 %v765
          %v767 = vpop.xlane.xlu0 %766
          %v768 = vsel %vm761, %v757, -inf
          %769 = vmax.xlane.f32.xlu0 %v768
          %v770 = vpop.xlane.xlu0 %769
          %v771 = vsel %vm761, %v759, -inf
          %772 = vmax.xlane.f32.xlu0 %v771
          %v773 = vpop.xlane.xlu0 %772
          %v774 = vsub.f32 %v727, %v764
          %v775 = vsub.f32 %v729, %v767
          %v776 = vsub.f32 %v757, %v770
          %v777 = vsub.f32 %v759, %v773
          %v778 = vmul.f32 %v774, 1.442695
          %v779 = vpow.pop %v778
          %v780 = vmul.f32 %v775, 1.442695
          %v781 = vpow.pop %v780
          %v782 = vmul.f32 %v776, 1.442695
          %v783 = vpow.pop %v782
          %v784 = vmul.f32 %v777, 1.442695
          %v785 = vpow.pop %v784
          %v786 = vsel %vm761, %v779, 0.0
          %787 = vadd.xlane.f32.xlu0 %v786
          %v788 = vpop.xlane.xlu0 %787
          %v789 = vsel %vm761, %v781, 0.0
          %790 = vadd.xlane.f32.xlu0 %v789
          %v791 = vpop.xlane.xlu0 %790
          %v792 = vsel %vm761, %v783, 0.0
          %793 = vadd.xlane.f32.xlu0 %v792
          %v794 = vpop.xlane.xlu0 %793
          %v795 = vsel %vm761, %v785, 0.0
          %796 = vadd.xlane.f32.xlu0 %v795
          %v797 = vpop.xlane.xlu0 %796
          %v798 = vrcp.pop %v788
          %v799 = vrcp.pop %v791
          %v800 = vrcp.pop %v794
          %v801 = vrcp.pop %v797
          %v802 = vmul.f32 %v779, %v798
          %v803 = vmul.f32 %v781, %v799
          %v804 = vmul.f32 %v783, %v800
          %v805 = vmul.f32 %v785, %v801
          %v806 = vpack.c.bf16 %v802, %v802
          %v807 = vpack.c.bf16 %v803, %v803
          %v808 = vpack.c.bf16 %v804, %v804
          %v809 = vpack.c.bf16 %v805, %v805
          %v812 = vunpack.c.l.b16 %v806
          %v813 = vunpack.c.l.b16 %v807
          %v814 = vpack.c.b16 %v813, %v812
          %v817 = vunpack.c.l.b16 %v696
          %v818 = vunpack.c.l.b16 %v697
          %v819 = vpack.c.b16 %v818, %v817
          %v822 = vsel %vm761, %v814, 0
          %824 = vmatpush.bf16.msra.mxu0 0
          %825 = vmatpush.bf16.msra.mxu0 0
          %826 = vmatpush.bf16.msra.mxu0 0
          %827 = vmatpush.bf16.msra.mxu0 0
          %828 = vmatpush.bf16.msra.mxu0 0
          %829 = vmatpush.bf16.msra.mxu0 0
          %830 = vmatpush.bf16.msra.mxu0 0
          %831 = vmatpush.bf16.msra.mxu0 %v819
          %832 = vmatmul.bf16.gmra.mxu0 %v822
          %v833 = vpop.f32.mrf.mxu0
          %v834 = vadd.f32 0.0, %v833
          %v835 = vpop.f32.mrf.mxu0
          %v836 = vadd.f32 0.0, %v835
          %837 = vdwg.mxu0
          %v840 = vunpack.c.l.b16 %v808
          %v841 = vunpack.c.l.b16 %v809
          %v842 = vpack.c.b16 %v841, %v840
          %v845 = vunpack.c.l.b16 %v698
          %v846 = vunpack.c.l.b16 %v699
          %v847 = vpack.c.b16 %v846, %v845
          %v850 = vsel %vm761, %v842, 0
          %852 = vmatpush.bf16.msra.mxu0 0
          %853 = vmatpush.bf16.msra.mxu0 0
          %854 = vmatpush.bf16.msra.mxu0 0
          %855 = vmatpush.bf16.msra.mxu0 0
          %856 = vmatpush.bf16.msra.mxu0 0
          %857 = vmatpush.bf16.msra.mxu0 0
          %858 = vmatpush.bf16.msra.mxu0 0
          %859 = vmatpush.bf16.msra.mxu0 %v847
          %860 = vmatmul.bf16.gmra.mxu0 %v850
          %v861 = vpop.f32.mrf.mxu0
          %v862 = vadd.f32 0.0, %v861
          %v863 = vpop.f32.mrf.mxu0
          %v864 = vadd.f32 0.0, %v863
          %865 = vdwg.mxu0
          %v866 = vpack.c.bf16 %v834, %v834
          %v867 = vpack.c.bf16 %v836, %v836
          %v868 = vpack.c.bf16 %v862, %v862
          %v869 = vpack.c.bf16 %v864, %v864
          %vm870 = vcmask 257024
          %871 = vst.msk [vmem:[#allocation2] sm:$0xf] %vm870, %v866
          %872 = vst.msk [vmem:[#allocation2 + $0x4] sm:$0xf] %vm870, %v867
          %873 = vst.msk [vmem:[#allocation2 + $0x8] sm:$0xf] %vm870, %v868
          %874 = vst.msk [vmem:[#allocation2 + $0xc] sm:$0xf] %vm870, %v869
          %875 = vrot.lane.b32.xlu0 %v704, 96
          %v876 = vpop.permute.xlu0 %875
          %877 = vrot.lane.b32.xlu0 %v709, 96
          %v878 = vpop.permute.xlu0 %877
          %v880 = vsel %vm710, %v876, 0
          %v883 = vsel %vm710, %v878, 0
          %885 = vmatpush.bf16.xpose.msra.mxu0 0
          %886 = vmatpush.bf16.xpose.msra.mxu0 0
          %887 = vmatpush.bf16.xpose.msra.mxu0 0
          %888 = vmatpush.bf16.xpose.msra.mxu0 0
          %889 = vmatpush.bf16.xpose.msra.mxu0 0
          %890 = vmatpush.bf16.xpose.msra.mxu0 0
          %891 = vmatpush.bf16.xpose.msra.mxu0 0
          %892 = vmatpush.bf16.xpose.msra.mxu0 %v883
          %893 = vmatmul.bf16.gmra.mxu0 %v880
          %v894 = vpop.f32.mrf.mxu0
          %v895 = vadd.f32 0.0, %v894
          %v896 = vpop.f32.mrf.mxu0
          %v897 = vadd.f32 0.0, %v896
          %898 = vdwg.mxu0
          %899 = vrot.lane.b32.xlu0 %v735, 96
          %v900 = vpop.permute.xlu0 %899
          %901 = vrot.lane.b32.xlu0 %v740, 96
          %v902 = vpop.permute.xlu0 %901
          %v904 = vsel %vm710, %v900, 0
          %v907 = vsel %vm710, %v902, 0
          %909 = vmatpush.bf16.xpose.msra.mxu0 0
          %910 = vmatpush.bf16.xpose.msra.mxu0 0
          %911 = vmatpush.bf16.xpose.msra.mxu0 0
          %912 = vmatpush.bf16.xpose.msra.mxu0 0
          %913 = vmatpush.bf16.xpose.msra.mxu0 0
          %914 = vmatpush.bf16.xpose.msra.mxu0 0
          %915 = vmatpush.bf16.xpose.msra.mxu0 0
          %916 = vmatpush.bf16.xpose.msra.mxu0 %v907
          %917 = vmatmul.bf16.gmra.mxu0 %v904
          %v918 = vpop.f32.mrf.mxu0
          %v919 = vadd.f32 0.0, %v918
          %v920 = vpop.f32.mrf.mxu0
          %v921 = vadd.f32 0.0, %v920
          %922 = vdwg.mxu0
          %v923 = vsel %vm761, %v895, -inf
          %924 = vmax.xlane.f32.xlu0 %v923
          %v925 = vpop.xlane.xlu0 %924
          %v926 = vsel %vm761, %v897, -inf
          %927 = vmax.xlane.f32.xlu0 %v926
          %v928 = vpop.xlane.xlu0 %927
          %v929 = vsel %vm761, %v919, -inf
          %930 = vmax.xlane.f32.xlu0 %v929
          %v931 = vpop.xlane.xlu0 %930
          %v932 = vsel %vm761, %v921, -inf
          %933 = vmax.xlane.f32.xlu0 %v932
          %v934 = vpop.xlane.xlu0 %933
          %v935 = vsub.f32 %v895, %v925
          %v936 = vsub.f32 %v897, %v928
          %v937 = vsub.f32 %v919, %v931
          %v938 = vsub.f32 %v921, %v934
          %v939 = vmul.f32 %v935, 1.442695
          %v940 = vpow.pop %v939
          %v941 = vmul.f32 %v936, 1.442695
          %v942 = vpow.pop %v941
          %v943 = vmul.f32 %v937, 1.442695
          %v944 = vpow.pop %v943
          %v945 = vmul.f32 %v938, 1.442695
          %v946 = vpow.pop %v945
          %v947 = vsel %vm761, %v940, 0.0
          %948 = vadd.xlane.f32.xlu0 %v947
          %v949 = vpop.xlane.xlu0 %948
          %v950 = vsel %vm761, %v942, 0.0
          %951 = vadd.xlane.f32.xlu0 %v950
          %v952 = vpop.xlane.xlu0 %951
          %v953 = vsel %vm761, %v944, 0.0
          %954 = vadd.xlane.f32.xlu0 %v953
          %v955 = vpop.xlane.xlu0 %954
          %v956 = vsel %vm761, %v946, 0.0
          %957 = vadd.xlane.f32.xlu0 %v956
          %v958 = vpop.xlane.xlu0 %957
          %v959 = vrcp.pop %v949
          %v960 = vrcp.pop %v952
          %v961 = vrcp.pop %v955
          %v962 = vrcp.pop %v958
          %v963 = vmul.f32 %v940, %v959
          %v964 = vmul.f32 %v942, %v960
          %v965 = vmul.f32 %v944, %v961
          %v966 = vmul.f32 %v946, %v962
          %v967 = vpack.c.bf16 %v963, %v963
          %v968 = vpack.c.bf16 %v964, %v964
          %v969 = vpack.c.bf16 %v965, %v965
          %v970 = vpack.c.bf16 %v966, %v966
          %v973 = vunpack.c.l.b16 %v967
          %v974 = vunpack.c.l.b16 %v968
          %v975 = vpack.c.b16 %v974, %v973
          %976 = vrot.lane.b32.xlu0 %v819, 96
          %v977 = vpop.permute.xlu0 %976
          %v980 = vsel %vm761, %v975, 0
          %982 = vmatpush.bf16.msra.mxu0 0
          %983 = vmatpush.bf16.msra.mxu0 0
          %984 = vmatpush.bf16.msra.mxu0 0
          %985 = vmatpush.bf16.msra.mxu0 0
          %986 = vmatpush.bf16.msra.mxu0 0
          %987 = vmatpush.bf16.msra.mxu0 0
          %988 = vmatpush.bf16.msra.mxu0 0
          %989 = vmatpush.bf16.msra.mxu0 %v977
          %990 = vmatmul.bf16.gmra.mxu0 %v980
          %v991 = vpop.f32.mrf.mxu0
          %v992 = vadd.f32 0.0, %v991
          %v993 = vpop.f32.mrf.mxu0
          %v994 = vadd.f32 0.0, %v993
          %995 = vdwg.mxu0
          %v998 = vunpack.c.l.b16 %v969
          %v999 = vunpack.c.l.b16 %v970
          %v1000 = vpack.c.b16 %v999, %v998
          %1001 = vrot.lane.b32.xlu0 %v847, 96
          %v1002 = vpop.permute.xlu0 %1001
          %v1005 = vsel %vm761, %v1000, 0
          %1007 = vmatpush.bf16.msra.mxu0 0
          %1008 = vmatpush.bf16.msra.mxu0 0
          %1009 = vmatpush.bf16.msra.mxu0 0
          %1010 = vmatpush.bf16.msra.mxu0 0
          %1011 = vmatpush.bf16.msra.mxu0 0
          %1012 = vmatpush.bf16.msra.mxu0 0
          %1013 = vmatpush.bf16.msra.mxu0 0
          %1014 = vmatpush.bf16.msra.mxu0 %v1002
          %1015 = vmatmul.bf16.gmra.mxu0 %v1005
          %v1016 = vpop.f32.mrf.mxu0
          %v1017 = vadd.f32 0.0, %v1016
          %v1018 = vpop.f32.mrf.mxu0
          %v1019 = vadd.f32 0.0, %v1018
          %1020 = vdwg.mxu0
          %v1021 = vpack.c.bf16 %v992, %v992
          %v1022 = vpack.c.bf16 %v994, %v994
          %v1023 = vpack.c.bf16 %v1017, %v1017
          %v1024 = vpack.c.bf16 %v1019, %v1019
          %1029 = vrot.lane.b32.xlu0 %v1021, 32
          %v1030 = vpop.permute.xlu0 %1029
          %1031 = vrot.lane.b32.xlu0 %v1022, 32
          %v1032 = vpop.permute.xlu0 %1031
          %1033 = vrot.lane.b32.xlu0 %v1023, 32
          %v1034 = vpop.permute.xlu0 %1033
          %1035 = vrot.lane.b32.xlu0 %v1024, 32
          %v1036 = vpop.permute.xlu0 %1035
          %vm1041 = vcmask 519424
          %1042 = vst.msk [vmem:[#allocation2] sm:$0xf] %vm1041, %v1030
          %1043 = vst.msk [vmem:[#allocation2 + $0x4] sm:$0xf] %vm1041, %v1032
          %1044 = vst.msk [vmem:[#allocation2 + $0x8] sm:$0xf] %vm1041, %v1034
          %1045 = vst.msk [vmem:[#allocation2 + $0xc] sm:$0xf] %vm1041, %v1036
          %1046 = vrot.lane.b32.xlu0 %v704, 64
          %v1047 = vpop.permute.xlu0 %1046
          %1048 = vrot.lane.b32.xlu0 %v709, 64
          %v1049 = vpop.permute.xlu0 %1048
          %v1051 = vsel %vm710, %v1047, 0
          %v1054 = vsel %vm710, %v1049, 0
          %1056 = vmatpush.bf16.xpose.msra.mxu0 0
          %1057 = vmatpush.bf16.xpose.msra.mxu0 0
          %1058 = vmatpush.bf16.xpose.msra.mxu0 0
          %1059 = vmatpush.bf16.xpose.msra.mxu0 0
          %1060 = vmatpush.bf16.xpose.msra.mxu0 0
          %1061 = vmatpush.bf16.xpose.msra.mxu0 0
          %1062 = vmatpush.bf16.xpose.msra.mxu0 0
          %1063 = vmatpush.bf16.xpose.msra.mxu0 %v1054
          %1064 = vmatmul.bf16.gmra.mxu0 %v1051
          %v1065 = vpop.f32.mrf.mxu0
          %v1066 = vadd.f32 0.0, %v1065
          %v1067 = vpop.f32.mrf.mxu0
          %v1068 = vadd.f32 0.0, %v1067
          %1069 = vdwg.mxu0
          %1070 = vrot.lane.b32.xlu0 %v735, 64
          %v1071 = vpop.permute.xlu0 %1070
          %1072 = vrot.lane.b32.xlu0 %v740, 64
          %v1073 = vpop.permute.xlu0 %1072
          %v1075 = vsel %vm710, %v1071, 0
          %v1078 = vsel %vm710, %v1073, 0
          %1080 = vmatpush.bf16.xpose.msra.mxu0 0
          %1081 = vmatpush.bf16.xpose.msra.mxu0 0
          %1082 = vmatpush.bf16.xpose.msra.mxu0 0
          %1083 = vmatpush.bf16.xpose.msra.mxu0 0
          %1084 = vmatpush.bf16.xpose.msra.mxu0 0
          %1085 = vmatpush.bf16.xpose.msra.mxu0 0
          %1086 = vmatpush.bf16.xpose.msra.mxu0 0
          %1087 = vmatpush.bf16.xpose.msra.mxu0 %v1078
          %1088 = vmatmul.bf16.gmra.mxu0 %v1075
          %v1089 = vpop.f32.mrf.mxu0
          %v1090 = vadd.f32 0.0, %v1089
          %v1091 = vpop.f32.mrf.mxu0
          %v1092 = vadd.f32 0.0, %v1091
          %1093 = vdwg.mxu0
          %v1094 = vsel %vm761, %v1066, -inf
          %1095 = vmax.xlane.f32.xlu0 %v1094
          %v1096 = vpop.xlane.xlu0 %1095
          %v1097 = vsel %vm761, %v1068, -inf
          %1098 = vmax.xlane.f32.xlu0 %v1097
          %v1099 = vpop.xlane.xlu0 %1098
          %v1100 = vsel %vm761, %v1090, -inf
          %1101 = vmax.xlane.f32.xlu0 %v1100
          %v1102 = vpop.xlane.xlu0 %1101
          %v1103 = vsel %vm761, %v1092, -inf
          %1104 = vmax.xlane.f32.xlu0 %v1103
          %v1105 = vpop.xlane.xlu0 %1104
          %v1106 = vsub.f32 %v1066, %v1096
          %v1107 = vsub.f32 %v1068, %v1099
          %v1108 = vsub.f32 %v1090, %v1102
          %v1109 = vsub.f32 %v1092, %v1105
          %v1110 = vmul.f32 %v1106, 1.442695
          %v1111 = vpow.pop %v1110
          %v1112 = vmul.f32 %v1107, 1.442695
          %v1113 = vpow.pop %v1112
          %v1114 = vmul.f32 %v1108, 1.442695
          %v1115 = vpow.pop %v1114
          %v1116 = vmul.f32 %v1109, 1.442695
          %v1117 = vpow.pop %v1116
          %v1118 = vsel %vm761, %v1111, 0.0
          %1119 = vadd.xlane.f32.xlu0 %v1118
          %v1120 = vpop.xlane.xlu0 %1119
          %v1121 = vsel %vm761, %v1113, 0.0
          %1122 = vadd.xlane.f32.xlu0 %v1121
          %v1123 = vpop.xlane.xlu0 %1122
          %v1124 = vsel %vm761, %v1115, 0.0
          %1125 = vadd.xlane.f32.xlu0 %v1124
          %v1126 = vpop.xlane.xlu0 %1125
          %v1127 = vsel %vm761, %v1117, 0.0
          %1128 = vadd.xlane.f32.xlu0 %v1127
          %v1129 = vpop.xlane.xlu0 %1128
          %v1130 = vrcp.pop %v1120
          %v1131 = vrcp.pop %v1123
          %v1132 = vrcp.pop %v1126
          %v1133 = vrcp.pop %v1129
          %v1134 = vmul.f32 %v1111, %v1130
          %v1135 = vmul.f32 %v1113, %v1131
          %v1136 = vmul.f32 %v1115, %v1132
          %v1137 = vmul.f32 %v1117, %v1133
          %v1138 = vpack.c.bf16 %v1134, %v1134
          %v1139 = vpack.c.bf16 %v1135, %v1135
          %v1140 = vpack.c.bf16 %v1136, %v1136
          %v1141 = vpack.c.bf16 %v1137, %v1137
          %v1144 = vunpack.c.l.b16 %v1138
          %v1145 = vunpack.c.l.b16 %v1139
          %v1146 = vpack.c.b16 %v1145, %v1144
          %1147 = vrot.lane.b32.xlu0 %v819, 64
          %v1148 = vpop.permute.xlu0 %1147
          %v1151 = vsel %vm761, %v1146, 0
          %1153 = vmatpush.bf16.msra.mxu0 0
          %1154 = vmatpush.bf16.msra.mxu0 0
          %1155 = vmatpush.bf16.msra.mxu0 0
          %1156 = vmatpush.bf16.msra.mxu0 0
          %1157 = vmatpush.bf16.msra.mxu0 0
          %1158 = vmatpush.bf16.msra.mxu0 0
          %1159 = vmatpush.bf16.msra.mxu0 0
          %1160 = vmatpush.bf16.msra.mxu0 %v1148
          %1161 = vmatmul.bf16.gmra.mxu0 %v1151
          %v1162 = vpop.f32.mrf.mxu0
          %v1163 = vadd.f32 0.0, %v1162
          %v1164 = vpop.f32.mrf.mxu0
          %v1165 = vadd.f32 0.0, %v1164
          %1166 = vdwg.mxu0
          %v1169 = vunpack.c.l.b16 %v1140
          %v1170 = vunpack.c.l.b16 %v1141
          %v1171 = vpack.c.b16 %v1170, %v1169
          %1172 = vrot.lane.b32.xlu0 %v847, 64
          %v1173 = vpop.permute.xlu0 %1172
          %v1176 = vsel %vm761, %v1171, 0
          %1178 = vmatpush.bf16.msra.mxu0 0
          %1179 = vmatpush.bf16.msra.mxu0 0
          %1180 = vmatpush.bf16.msra.mxu0 0
          %1181 = vmatpush.bf16.msra.mxu0 0
          %1182 = vmatpush.bf16.msra.mxu0 0
          %1183 = vmatpush.bf16.msra.mxu0 0
          %1184 = vmatpush.bf16.msra.mxu0 0
          %1185 = vmatpush.bf16.msra.mxu0 %v1173
          %1186 = vmatmul.bf16.gmra.mxu0 %v1176
          %v1187 = vpop.f32.mrf.mxu0
          %v1188 = vadd.f32 0.0, %v1187
          %v1189 = vpop.f32.mrf.mxu0
          %v1190 = vadd.f32 0.0, %v1189
          %1191 = vdwg.mxu0
          %v1192 = vpack.c.bf16 %v1163, %v1163
          %v1193 = vpack.c.bf16 %v1165, %v1165
          %v1194 = vpack.c.bf16 %v1188, %v1188
          %v1195 = vpack.c.bf16 %v1190, %v1190
          %1200 = vrot.lane.b32.xlu0 %v1192, 64
          %v1201 = vpop.permute.xlu0 %1200
          %1202 = vrot.lane.b32.xlu0 %v1193, 64
          %v1203 = vpop.permute.xlu0 %1202
          %1204 = vrot.lane.b32.xlu0 %v1194, 64
          %v1205 = vpop.permute.xlu0 %1204
          %1206 = vrot.lane.b32.xlu0 %v1195, 64
          %v1207 = vpop.permute.xlu0 %1206
          %vm1212 = vcmask 781824
          %1213 = vst.msk [vmem:[#allocation2] sm:$0xf] %vm1212, %v1201
          %1214 = vst.msk [vmem:[#allocation2 + $0x4] sm:$0xf] %vm1212, %v1203
          %1215 = vst.msk [vmem:[#allocation2 + $0x8] sm:$0xf] %vm1212, %v1205
          %1216 = vst.msk [vmem:[#allocation2 + $0xc] sm:$0xf] %vm1212, %v1207
          %1217 = vrot.lane.b32.xlu0 %v704, 32
          %v1218 = vpop.permute.xlu0 %1217
          %1219 = vrot.lane.b32.xlu0 %v709, 32
          %v1220 = vpop.permute.xlu0 %1219
          %v1222 = vsel %vm710, %v1218, 0
          %v1225 = vsel %vm710, %v1220, 0
          %1227 = vmatpush.bf16.xpose.msra.mxu0 0
          %1228 = vmatpush.bf16.xpose.msra.mxu0 0
          %1229 = vmatpush.bf16.xpose.msra.mxu0 0
          %1230 = vmatpush.bf16.xpose.msra.mxu0 0
          %1231 = vmatpush.bf16.xpose.msra.mxu0 0
          %1232 = vmatpush.bf16.xpose.msra.mxu0 0
          %1233 = vmatpush.bf16.xpose.msra.mxu0 0
          %1234 = vmatpush.bf16.xpose.msra.mxu0 %v1225
          %1235 = vmatmul.bf16.gmra.mxu0 %v1222
          %v1236 = vpop.f32.mrf.mxu0
          %v1237 = vadd.f32 0.0, %v1236
          %v1238 = vpop.f32.mrf.mxu0
          %v1239 = vadd.f32 0.0, %v1238
          %1240 = vdwg.mxu0
          %1241 = vrot.lane.b32.xlu0 %v735, 32
          %v1242 = vpop.permute.xlu0 %1241
          %1243 = vrot.lane.b32.xlu0 %v740, 32
          %v1244 = vpop.permute.xlu0 %1243
          %v1246 = vsel %vm710, %v1242, 0
          %v1249 = vsel %vm710, %v1244, 0
          %1251 = vmatpush.bf16.xpose.msra.mxu0 0
          %1252 = vmatpush.bf16.xpose.msra.mxu0 0
          %1253 = vmatpush.bf16.xpose.msra.mxu0 0
          %1254 = vmatpush.bf16.xpose.msra.mxu0 0
          %1255 = vmatpush.bf16.xpose.msra.mxu0 0
          %1256 = vmatpush.bf16.xpose.msra.mxu0 0
          %1257 = vmatpush.bf16.xpose.msra.mxu0 0
          %1258 = vmatpush.bf16.xpose.msra.mxu0 %v1249
          %1259 = vmatmul.bf16.gmra.mxu0 %v1246
          %v1260 = vpop.f32.mrf.mxu0
          %v1261 = vadd.f32 0.0, %v1260
          %v1262 = vpop.f32.mrf.mxu0
          %v1263 = vadd.f32 0.0, %v1262
          %1264 = vdwg.mxu0
          %v1265 = vsel %vm761, %v1237, -inf
          %1266 = vmax.xlane.f32.xlu0 %v1265
          %v1267 = vpop.xlane.xlu0 %1266
          %v1268 = vsel %vm761, %v1239, -inf
          %1269 = vmax.xlane.f32.xlu0 %v1268
          %v1270 = vpop.xlane.xlu0 %1269
          %v1271 = vsel %vm761, %v1261, -inf
          %1272 = vmax.xlane.f32.xlu0 %v1271
          %v1273 = vpop.xlane.xlu0 %1272
          %v1274 = vsel %vm761, %v1263, -inf
          %1275 = vmax.xlane.f32.xlu0 %v1274
          %v1276 = vpop.xlane.xlu0 %1275
          %v1277 = vsub.f32 %v1237, %v1267
          %v1278 = vsub.f32 %v1239, %v1270
          %v1279 = vsub.f32 %v1261, %v1273
          %v1280 = vsub.f32 %v1263, %v1276
          %v1281 = vmul.f32 %v1277, 1.442695
          %v1282 = vpow.pop %v1281
          %v1283 = vmul.f32 %v1278, 1.442695
          %v1284 = vpow.pop %v1283
          %v1285 = vmul.f32 %v1279, 1.442695
          %v1286 = vpow.pop %v1285
          %v1287 = vmul.f32 %v1280, 1.442695
          %v1288 = vpow.pop %v1287
          %v1289 = vsel %vm761, %v1282, 0.0
          %1290 = vadd.xlane.f32.xlu0 %v1289
          %v1291 = vpop.xlane.xlu0 %1290
          %v1292 = vsel %vm761, %v1284, 0.0
          %1293 = vadd.xlane.f32.xlu0 %v1292
          %v1294 = vpop.xlane.xlu0 %1293
          %v1295 = vsel %vm761, %v1286, 0.0
          %1296 = vadd.xlane.f32.xlu0 %v1295
          %v1297 = vpop.xlane.xlu0 %1296
          %v1298 = vsel %vm761, %v1288, 0.0
          %1299 = vadd.xlane.f32.xlu0 %v1298
          %v1300 = vpop.xlane.xlu0 %1299
          %v1301 = vrcp.pop %v1291
          %v1302 = vrcp.pop %v1294
          %v1303 = vrcp.pop %v1297
          %v1304 = vrcp.pop %v1300
          %v1305 = vmul.f32 %v1282, %v1301
          %v1306 = vmul.f32 %v1284, %v1302
          %v1307 = vmul.f32 %v1286, %v1303
          %v1308 = vmul.f32 %v1288, %v1304
          %v1309 = vpack.c.bf16 %v1305, %v1305
          %v1310 = vpack.c.bf16 %v1306, %v1306
          %v1311 = vpack.c.bf16 %v1307, %v1307
          %v1312 = vpack.c.bf16 %v1308, %v1308
          %v1315 = vunpack.c.l.b16 %v1309
          %v1316 = vunpack.c.l.b16 %v1310
          %v1317 = vpack.c.b16 %v1316, %v1315
          %1318 = vrot.lane.b32.xlu0 %v819, 32
          %v1319 = vpop.permute.xlu0 %1318
          %v1322 = vsel %vm761, %v1317, 0
          %1324 = vmatpush.bf16.msra.mxu0 0
          %1325 = vmatpush.bf16.msra.mxu0 0
          %1326 = vmatpush.bf16.msra.mxu0 0
          %1327 = vmatpush.bf16.msra.mxu0 0
          %1328 = vmatpush.bf16.msra.mxu0 0
          %1329 = vmatpush.bf16.msra.mxu0 0
          %1330 = vmatpush.bf16.msra.mxu0 0
          %1331 = vmatpush.bf16.msra.mxu0 %v1319
          %1332 = vmatmul.bf16.gmra.mxu0 %v1322
          %v1333 = vpop.f32.mrf.mxu0
          %v1334 = vadd.f32 0.0, %v1333
          %v1335 = vpop.f32.mrf.mxu0
          %v1336 = vadd.f32 0.0, %v1335
          %1337 = vdwg.mxu0
          %v1340 = vunpack.c.l.b16 %v1311
          %v1341 = vunpack.c.l.b16 %v1312
          %v1342 = vpack.c.b16 %v1341, %v1340
          %1343 = vrot.lane.b32.xlu0 %v847, 32
          %v1344 = vpop.permute.xlu0 %1343
          %v1347 = vsel %vm761, %v1342, 0
          %1349 = vmatpush.bf16.msra.mxu0 0
          %1350 = vmatpush.bf16.msra.mxu0 0
          %1351 = vmatpush.bf16.msra.mxu0 0
          %1352 = vmatpush.bf16.msra.mxu0 0
          %1353 = vmatpush.bf16.msra.mxu0 0
          %1354 = vmatpush.bf16.msra.mxu0 0
          %1355 = vmatpush.bf16.msra.mxu0 0
          %1356 = vmatpush.bf16.msra.mxu0 %v1344
          %1357 = vmatmul.bf16.gmra.mxu0 %v1347
          %v1358 = vpop.f32.mrf.mxu0
          %v1359 = vadd.f32 0.0, %v1358
          %v1360 = vpop.f32.mrf.mxu0
          %v1361 = vadd.f32 0.0, %v1360
          %1362 = vdwg.mxu0
          %v1363 = vpack.c.bf16 %v1334, %v1334
          %v1364 = vpack.c.bf16 %v1336, %v1336
          %v1365 = vpack.c.bf16 %v1359, %v1359
          %v1366 = vpack.c.bf16 %v1361, %v1361
          %1371 = vrot.lane.b32.xlu0 %v1363, 96
          %v1372 = vpop.permute.xlu0 %1371
          %1373 = vrot.lane.b32.xlu0 %v1364, 96
          %v1374 = vpop.permute.xlu0 %1373
          %1375 = vrot.lane.b32.xlu0 %v1365, 96
          %v1376 = vpop.permute.xlu0 %1375
          %1377 = vrot.lane.b32.xlu0 %v1366, 96
          %v1378 = vpop.permute.xlu0 %1377
          %vm1383 = vcmask 1044224
          %1384 = vst.msk [vmem:[#allocation2] sm:$0xf] %vm1383, %v1372
          %1385 = vst.msk [vmem:[#allocation2 + $0x4] sm:$0xf] %vm1383, %v1374
          %1386 = vst.msk [vmem:[#allocation2 + $0x8] sm:$0xf] %vm1383, %v1376
          %1387 = vst.msk [vmem:[#allocation2 + $0xc] sm:$0xf] %vm1383, %v1378
          %v1388 = vld [vmem:[#allocation2] sm:$0xf]
          %v1389 = vld [vmem:[#allocation2 + $0x4] sm:$0xf]
          %v1390 = vld [vmem:[#allocation2 + $0x8] sm:$0xf]
          %v1391 = vld [vmem:[#allocation2 + $0xc] sm:$0xf]
          %v1396 = vunpack.c.l.b16 %v1388
          %v1397 = vunpack.c.l.b16 %v1389
          %v1398 = vunpack.c.l.b16 %v1390
          %v1399 = vunpack.c.l.b16 %v1391
          %v1400 = vpack.c.b16 %v1397, %v1396
          %v1401 = vpack.c.b16 %v1399, %v1398
          %v1420 = vunpack.c.l.b16 %v427
          %v1421 = vunpack.c.l.b16 %v428
          %v1422 = vunpack.c.l.b16 %v429
          %v1423 = vunpack.c.l.b16 %v430
          %v1424 = vunpack.c.l.b16 %v431
          %v1425 = vunpack.c.l.b16 %v432
          %v1426 = vunpack.c.l.b16 %v433
          %v1427 = vunpack.c.l.b16 %v434
          %v1428 = vunpack.c.l.b16 %v435
          %v1429 = vunpack.c.l.b16 %v436
          %v1430 = vunpack.c.l.b16 %v437
          %v1431 = vunpack.c.l.b16 %v438
          %v1432 = vunpack.c.l.b16 %v439
          %v1433 = vunpack.c.l.b16 %v440
          %v1434 = vunpack.c.l.b16 %v441
          %v1435 = vunpack.c.l.b16 %v442
          %v1436 = vpack.c.b16 %v1421, %v1420
          %v1437 = vpack.c.b16 %v1423, %v1422
          %v1438 = vpack.c.b16 %v1425, %v1424
          %v1439 = vpack.c.b16 %v1427, %v1426
          %v1440 = vpack.c.b16 %v1429, %v1428
          %v1441 = vpack.c.b16 %v1431, %v1430
          %v1442 = vpack.c.b16 %v1433, %v1432
          %v1443 = vpack.c.b16 %v1435, %v1434
          %1452 = vmatpush.bf16.msra.mxu0 %v1443
          %1453 = vmatpush.bf16.msra.mxu0 %v1442
          %1454 = vmatpush.bf16.msra.mxu0 %v1441
          %1455 = vmatpush.bf16.msra.mxu0 %v1440
          %1456 = vmatpush.bf16.msra.mxu0 %v1439
          %1457 = vmatpush.bf16.msra.mxu0 %v1438
          %1458 = vmatpush.bf16.msra.mxu0 %v1437
          %1459 = vmatpush.bf16.msra.mxu0 %v1436
          %1460 = vmatmul.bf16.gmra.mxu0 %v1400
          %v1461 = vpop.f32.mrf.mxu0
          %v1462 = vadd.f32 %v385, %v1461
          %v1463 = vpop.f32.mrf.mxu0
          %v1464 = vadd.f32 %v386, %v1463
          %1465 = vmatmul.bf16.gmra.mxu0 %v1401
          %v1466 = vpop.f32.mrf.mxu0
          %v1467 = vadd.f32 %v387, %v1466
          %v1468 = vpop.f32.mrf.mxu0
          %v1469 = vadd.f32 %v388, %v1468
          %1470 = vdwg.mxu0
          %1471 = vadd.xlane.f32.xlu0 %v1462
          %v1472 = vpop.xlane.xlu0 %1471
          %1473 = vadd.xlane.f32.xlu0 %v1464
          %v1474 = vpop.xlane.xlu0 %1473
          %1475 = vadd.xlane.f32.xlu0 %v1467
          %v1476 = vpop.xlane.xlu0 %1475
          %1477 = vadd.xlane.f32.xlu0 %v1469
          %v1478 = vpop.xlane.xlu0 %1477
          %v1479 = vrcp.pop 128.0
          %v1480 = vmul.f32 128.0, %v1479
          %v1481 = vsub.f32 1.0, %v1480
          %v1482 = vmul.f32 %v1479, %v1481
          %v1483 = vadd.f32 %v1479, %v1482
          %vm1484 = vweird.f32 %v1479
          %v1485 = vsel %vm1484, %v1479, %v1483
          %v1486 = vmul.f32 %v1472, %v1485
          %v1487 = vmul.f32 %v1474, %v1485
          %v1488 = vmul.f32 %v1476, %v1485
          %v1489 = vmul.f32 %v1478, %v1485
          %v1490 = vsub.f32 %v1462, %v1486
          %v1491 = vsub.f32 %v1464, %v1487
          %v1492 = vsub.f32 %v1467, %v1488
          %v1493 = vsub.f32 %v1469, %v1489
          %v1494 = vmul.f32 %v1490, %v1490
          %v1495 = vmul.f32 %v1491, %v1491
          %v1496 = vmul.f32 %v1492, %v1492
          %v1497 = vmul.f32 %v1493, %v1493
          %1498 = vadd.xlane.f32.xlu0 %v1494
          %v1499 = vpop.xlane.xlu0 %1498
          %1500 = vadd.xlane.f32.xlu0 %v1495
          %v1501 = vpop.xlane.xlu0 %1500
          %1502 = vadd.xlane.f32.xlu0 %v1496
          %v1503 = vpop.xlane.xlu0 %1502
          %1504 = vadd.xlane.f32.xlu0 %v1497
          %v1505 = vpop.xlane.xlu0 %1504
          %v1506 = vmul.f32 %v1499, %v1485
          %v1507 = vmul.f32 %v1501, %v1485
          %v1508 = vmul.f32 %v1503, %v1485
          %v1509 = vmul.f32 %v1505, %v1485
          %v1510 = vadd.f32 %v1506, 1e-05
          %v1511 = vadd.f32 %v1507, 1e-05
          %v1512 = vadd.f32 %v1508, 1e-05
          %v1513 = vadd.f32 %v1509, 1e-05
          %v1514 = vrsqrt.pop %v1510
          %v1515 = vmul.f32 %v1514, %v1510
          %v1516 = vmul.f32 %v1515, %v1514
          %v1517 = vmul.f32 0.5, %v1516
          %v1518 = vsub.f32 1.5, %v1517
          %v1519 = vmul.f32 %v1514, %v1518
          %vm1520 = vweird.f32 %v1510
          %vm1521 = vweird.f32 %v1514
          %vm1522 = vmor %vm1520, %vm1521
          %v1523 = vsel %vm1522, %v1514, %v1519
          %v1524 = vrsqrt.pop %v1511
          %v1525 = vmul.f32 %v1524, %v1511
          %v1526 = vmul.f32 %v1525, %v1524
          %v1527 = vmul.f32 0.5, %v1526
          %v1528 = vsub.f32 1.5, %v1527
          %v1529 = vmul.f32 %v1524, %v1528
          %vm1530 = vweird.f32 %v1511
          %vm1531 = vweird.f32 %v1524
          %vm1532 = vmor %vm1530, %vm1531
          %v1533 = vsel %vm1532, %v1524, %v1529
          %v1534 = vrsqrt.pop %v1512
          %v1535 = vmul.f32 %v1534, %v1512
          %v1536 = vmul.f32 %v1535, %v1534
          %v1537 = vmul.f32 0.5, %v1536
          %v1538 = vsub.f32 1.5, %v1537
          %v1539 = vmul.f32 %v1534, %v1538
          %vm1540 = vweird.f32 %v1512
          %vm1541 = vweird.f32 %v1534
          %vm1542 = vmor %vm1540, %vm1541
          %v1543 = vsel %vm1542, %v1534, %v1539
          %v1544 = vrsqrt.pop %v1513
          %v1545 = vmul.f32 %v1544, %v1513
          %v1546 = vmul.f32 %v1545, %v1544
          %v1547 = vmul.f32 0.5, %v1546
          %v1548 = vsub.f32 1.5, %v1547
          %v1549 = vmul.f32 %v1544, %v1548
          %vm1550 = vweird.f32 %v1513
          %vm1551 = vweird.f32 %v1544
          %vm1552 = vmor %vm1550, %vm1551
          %v1553 = vsel %vm1552, %v1544, %v1549
          %v1554 = vmul.f32 %v1490, %v1523
          %v1555 = vmul.f32 %v1491, %v1533
          %v1556 = vmul.f32 %v1492, %v1543
          %v1557 = vmul.f32 %v1493, %v1553
          %v1558 = vperm.slane %v499, 2
          %v1559 = vmul.f32 %v1554, %v1558
          %v1560 = vmul.f32 %v1555, %v1558
          %v1561 = vmul.f32 %v1556, %v1558
          %v1562 = vmul.f32 %v1557, %v1558
          %v1563 = vperm.slane %v499, 3
          %v1564 = vadd.f32 %v1559, %v1563
          %v1565 = vadd.f32 %v1560, %v1563
          %v1566 = vadd.f32 %v1561, %v1563
          %v1567 = vadd.f32 %v1562, %v1563
          %v1568 = vpack.c.bf16 %v1565, %v1564
          %v1569 = vpack.c.bf16 %v1567, %v1566
          %v1570 = vperm.slane %v499, 0
          %v1571 = vperm.slane %v500, 0
          %v1588 = vunpack.c.l.b16 %v446
          %v1589 = vunpack.c.h.b16 %v446
          %v1590 = vunpack.c.l.b16 %v447
          %v1591 = vunpack.c.h.b16 %v447
          %v1592 = vunpack.c.l.b16 %v448
          %v1593 = vunpack.c.h.b16 %v448
          %v1594 = vunpack.c.l.b16 %v449
          %v1595 = vunpack.c.h.b16 %v449
          %v1596 = vunpack.c.l.b16 %v450
          %v1597 = vunpack.c.h.b16 %v450
          %v1598 = vunpack.c.l.b16 %v451
          %v1599 = vunpack.c.h.b16 %v451
          %v1600 = vunpack.c.l.b16 %v452
          %v1601 = vunpack.c.h.b16 %v452
          %v1602 = vunpack.c.l.b16 %v453
          %v1603 = vunpack.c.h.b16 %v453
          %v1604 = vunpack.c.l.b16 %v454
          %v1605 = vunpack.c.h.b16 %v454
          %v1606 = vunpack.c.l.b16 %v455
          %v1607 = vunpack.c.h.b16 %v455
          %v1608 = vunpack.c.l.b16 %v456
          %v1609 = vunpack.c.h.b16 %v456
          %v1610 = vunpack.c.l.b16 %v457
          %v1611 = vunpack.c.h.b16 %v457
          %v1612 = vunpack.c.l.b16 %v458
          %v1613 = vunpack.c.h.b16 %v458
          %v1614 = vunpack.c.l.b16 %v459
          %v1615 = vunpack.c.h.b16 %v459
          %v1616 = vunpack.c.l.b16 %v460
          %v1617 = vunpack.c.h.b16 %v460
          %v1618 = vunpack.c.l.b16 %v461
          %v1619 = vunpack.c.h.b16 %v461
          %v1620 = vpack.c.b16 %v1590, %v1588
          %v1621 = vpack.c.b16 %v1591, %v1589
          %v1622 = vpack.c.b16 %v1594, %v1592
          %v1623 = vpack.c.b16 %v1595, %v1593
          %v1624 = vpack.c.b16 %v1598, %v1596
          %v1625 = vpack.c.b16 %v1599, %v1597
          %v1626 = vpack.c.b16 %v1602, %v1600
          %v1627 = vpack.c.b16 %v1603, %v1601
          %v1628 = vpack.c.b16 %v1606, %v1604
          %v1629 = vpack.c.b16 %v1607, %v1605
          %v1630 = vpack.c.b16 %v1610, %v1608
          %v1631 = vpack.c.b16 %v1611, %v1609
          %v1632 = vpack.c.b16 %v1614, %v1612
          %v1633 = vpack.c.b16 %v1615, %v1613
          %v1634 = vpack.c.b16 %v1618, %v1616
          %v1635 = vpack.c.b16 %v1619, %v1617
          %1652 = vmatpush.bf16.msra.mxu0 %v1634
          %1653 = vmatpush.bf16.msra.mxu0 %v1632
          %1654 = vmatpush.bf16.msra.mxu0 %v1630
          %1655 = vmatpush.bf16.msra.mxu0 %v1628
          %1656 = vmatpush.bf16.msra.mxu0 %v1626
          %1657 = vmatpush.bf16.msra.mxu0 %v1624
          %1658 = vmatpush.bf16.msra.mxu0 %v1622
          %1659 = vmatpush.bf16.msra.mxu0 %v1620
          %1660 = vmatmul.bf16.gmra.mxu0 %v1568
          %v1661 = vpop.f32.mrf.mxu0
          %v1662 = vadd.f32 %v1570, %v1661
          %v1663 = vpop.f32.mrf.mxu0
          %v1664 = vadd.f32 %v1570, %v1663
          %1665 = vmatmul.bf16.gmra.mxu0 %v1569
          %v1666 = vpop.f32.mrf.mxu0
          %v1667 = vadd.f32 %v1570, %v1666
          %v1668 = vpop.f32.mrf.mxu0
          %v1669 = vadd.f32 %v1570, %v1668
          %1670 = vdwg.mxu0
          %1671 = vmatpush.bf16.msra.mxu0 %v1635
          %1672 = vmatpush.bf16.msra.mxu0 %v1633
          %1673 = vmatpush.bf16.msra.mxu0 %v1631
          %1674 = vmatpush.bf16.msra.mxu0 %v1629
          %1675 = vmatpush.bf16.msra.mxu0 %v1627
          %1676 = vmatpush.bf16.msra.mxu0 %v1625
          %1677 = vmatpush.bf16.msra.mxu0 %v1623
          %1678 = vmatpush.bf16.msra.mxu0 %v1621
          %1679 = vmatmul.bf16.gmra.mxu0 %v1568
          %v1680 = vpop.f32.mrf.mxu0
          %v1681 = vadd.f32 %v1571, %v1680
          %v1682 = vpop.f32.mrf.mxu0
          %v1683 = vadd.f32 %v1571, %v1682
          %1684 = vmatmul.bf16.gmra.mxu0 %v1569
          %v1685 = vpop.f32.mrf.mxu0
          %v1686 = vadd.f32 %v1571, %v1685
          %v1687 = vpop.f32.mrf.mxu0
          %v1688 = vadd.f32 %v1571, %v1687
          %1689 = vdwg.mxu0
          %v1690 = vmax.f32 %v1662, 0.0
          %v1691 = vmax.f32 %v1681, 0.0
          %v1692 = vmax.f32 %v1664, 0.0
          %v1693 = vmax.f32 %v1683, 0.0
          %v1694 = vmax.f32 %v1667, 0.0
          %v1695 = vmax.f32 %v1686, 0.0
          %v1696 = vmax.f32 %v1669, 0.0
          %v1697 = vmax.f32 %v1688, 0.0
          %v1698 = vpack.c.bf16 %v1692, %v1690
          %v1699 = vpack.c.bf16 %v1693, %v1691
          %v1700 = vpack.c.bf16 %v1696, %v1694
          %v1701 = vpack.c.bf16 %v1697, %v1695
          %v1702 = vperm.slane %v499, 1
          %v1735 = vunpack.c.l.b16 %v464
          %v1736 = vunpack.c.l.b16 %v465
          %v1737 = vunpack.c.l.b16 %v466
          %v1738 = vunpack.c.l.b16 %v467
          %v1739 = vunpack.c.l.b16 %v468
          %v1740 = vunpack.c.l.b16 %v469
          %v1741 = vunpack.c.l.b16 %v470
          %v1742 = vunpack.c.l.b16 %v471
          %v1743 = vunpack.c.l.b16 %v472
          %v1744 = vunpack.c.l.b16 %v473
          %v1745 = vunpack.c.l.b16 %v474
          %v1746 = vunpack.c.l.b16 %v475
          %v1747 = vunpack.c.l.b16 %v476
          %v1748 = vunpack.c.l.b16 %v477
          %v1749 = vunpack.c.l.b16 %v478
          %v1750 = vunpack.c.l.b16 %v479
          %v1751 = vunpack.c.l.b16 %v480
          %v1752 = vunpack.c.l.b16 %v481
          %v1753 = vunpack.c.l.b16 %v482
          %v1754 = vunpack.c.l.b16 %v483
          %v1755 = vunpack.c.l.b16 %v484
          %v1756 = vunpack.c.l.b16 %v485
          %v1757 = vunpack.c.l.b16 %v486
          %v1758 = vunpack.c.l.b16 %v487
          %v1759 = vunpack.c.l.b16 %v488
          %v1760 = vunpack.c.l.b16 %v489
          %v1761 = vunpack.c.l.b16 %v490
          %v1762 = vunpack.c.l.b16 %v491
          %v1763 = vunpack.c.l.b16 %v492
          %v1764 = vunpack.c.l.b16 %v493
          %v1765 = vunpack.c.l.b16 %v494
          %v1766 = vunpack.c.l.b16 %v495
          %v1767 = vpack.c.b16 %v1736, %v1735
          %v1768 = vpack.c.b16 %v1738, %v1737
          %v1769 = vpack.c.b16 %v1740, %v1739
          %v1770 = vpack.c.b16 %v1742, %v1741
          %v1771 = vpack.c.b16 %v1744, %v1743
          %v1772 = vpack.c.b16 %v1746, %v1745
          %v1773 = vpack.c.b16 %v1748, %v1747
          %v1774 = vpack.c.b16 %v1750, %v1749
          %v1775 = vpack.c.b16 %v1752, %v1751
          %v1776 = vpack.c.b16 %v1754, %v1753
          %v1777 = vpack.c.b16 %v1756, %v1755
          %v1778 = vpack.c.b16 %v1758, %v1757
          %v1779 = vpack.c.b16 %v1760, %v1759
          %v1780 = vpack.c.b16 %v1762, %v1761
          %v1781 = vpack.c.b16 %v1764, %v1763
          %v1782 = vpack.c.b16 %v1766, %v1765
          %1799 = vmatpush.bf16.msra.mxu0 %v1774
          %1800 = vmatpush.bf16.msra.mxu0 %v1773
          %1801 = vmatpush.bf16.msra.mxu0 %v1772
          %1802 = vmatpush.bf16.msra.mxu0 %v1771
          %1803 = vmatpush.bf16.msra.mxu0 %v1770
          %1804 = vmatpush.bf16.msra.mxu0 %v1769
          %1805 = vmatpush.bf16.msra.mxu0 %v1768
          %1806 = vmatpush.bf16.msra.mxu0 %v1767
          %1807 = vmatmul.bf16.gmra.mxu0 %v1698
          %v1808 = vpop.f32.mrf.mxu0
          %v1809 = vadd.f32 %v1702, %v1808
          %v1810 = vpop.f32.mrf.mxu0
          %v1811 = vadd.f32 %v1702, %v1810
          %1812 = vmatmul.bf16.gmra.mxu0 %v1700
          %v1813 = vpop.f32.mrf.mxu0
          %v1814 = vadd.f32 %v1702, %v1813
          %v1815 = vpop.f32.mrf.mxu0
          %v1816 = vadd.f32 %v1702, %v1815
          %1817 = vdwg.mxu0
          %1818 = vmatpush.bf16.msra.mxu0 %v1782
          %1819 = vmatpush.bf16.msra.mxu0 %v1781
          %1820 = vmatpush.bf16.msra.mxu0 %v1780
          %1821 = vmatpush.bf16.msra.mxu0 %v1779
          %1822 = vmatpush.bf16.msra.mxu0 %v1778
          %1823 = vmatpush.bf16.msra.mxu0 %v1777
          %1824 = vmatpush.bf16.msra.mxu0 %v1776
          %1825 = vmatpush.bf16.msra.mxu0 %v1775
          %1826 = vmatmul.bf16.gmra.mxu0 %v1699
          %v1827 = vpop.f32.mrf.mxu0
          %v1828 = vadd.f32 %v1809, %v1827
          %v1829 = vpop.f32.mrf.mxu0
          %v1830 = vadd.f32 %v1811, %v1829
          %1831 = vmatmul.bf16.gmra.mxu0 %v1701
          %v1832 = vpop.f32.mrf.mxu0
          %v1833 = vadd.f32 %v1814, %v1832
          %v1834 = vpop.f32.mrf.mxu0
          %v1835 = vadd.f32 %v1816, %v1834
          %1836 = vdwg.mxu0
          %v1837 = vadd.f32 %v1828, %v1564
          %v1838 = vadd.f32 %v1830, %v1565
          %v1839 = vadd.f32 %v1833, %v1566
          %v1840 = vadd.f32 %v1835, %v1567
          %1841 = vadd.xlane.f32.xlu0 %v1837
          %v1842 = vpop.xlane.xlu0 %1841
          %1843 = vadd.xlane.f32.xlu0 %v1838
          %v1844 = vpop.xlane.xlu0 %1843
          %1845 = vadd.xlane.f32.xlu0 %v1839
          %v1846 = vpop.xlane.xlu0 %1845
          %1847 = vadd.xlane.f32.xlu0 %v1840
          %v1848 = vpop.xlane.xlu0 %1847
          %v1849 = vmul.f32 %v1842, %v1485
          %v1850 = vmul.f32 %v1844, %v1485
          %v1851 = vmul.f32 %v1846, %v1485
          %v1852 = vmul.f32 %v1848, %v1485
          %v1853 = vsub.f32 %v1837, %v1849
          %v1854 = vsub.f32 %v1838, %v1850
          %v1855 = vsub.f32 %v1839, %v1851
          %v1856 = vsub.f32 %v1840, %v1852
          %v1857 = vmul.f32 %v1853, %v1853
          %v1858 = vmul.f32 %v1854, %v1854
          %v1859 = vmul.f32 %v1855, %v1855
          %v1860 = vmul.f32 %v1856, %v1856
          %1861 = vadd.xlane.f32.xlu0 %v1857
          %v1862 = vpop.xlane.xlu0 %1861
          %1863 = vadd.xlane.f32.xlu0 %v1858
          %v1864 = vpop.xlane.xlu0 %1863
          %1865 = vadd.xlane.f32.xlu0 %v1859
          %v1866 = vpop.xlane.xlu0 %1865
          %1867 = vadd.xlane.f32.xlu0 %v1860
          %v1868 = vpop.xlane.xlu0 %1867
          %v1869 = vmul.f32 %v1862, %v1485
          %v1870 = vmul.f32 %v1864, %v1485
          %v1871 = vmul.f32 %v1866, %v1485
          %v1872 = vmul.f32 %v1868, %v1485
          %v1873 = vadd.f32 %v1869, 1e-05
          %v1874 = vadd.f32 %v1870, 1e-05
          %v1875 = vadd.f32 %v1871, 1e-05
          %v1876 = vadd.f32 %v1872, 1e-05
          %v1877 = vrsqrt.pop %v1873
          %v1878 = vmul.f32 %v1877, %v1873
          %v1879 = vmul.f32 %v1878, %v1877
          %v1880 = vmul.f32 0.5, %v1879
          %v1881 = vsub.f32 1.5, %v1880
          %v1882 = vmul.f32 %v1877, %v1881
          %vm1883 = vweird.f32 %v1873
          %vm1884 = vweird.f32 %v1877
          %vm1885 = vmor %vm1883, %vm1884
          %v1886 = vsel %vm1885, %v1877, %v1882
          %v1887 = vrsqrt.pop %v1874
          %v1888 = vmul.f32 %v1887, %v1874
          %v1889 = vmul.f32 %v1888, %v1887
          %v1890 = vmul.f32 0.5, %v1889
          %v1891 = vsub.f32 1.5, %v1890
          %v1892 = vmul.f32 %v1887, %v1891
          %vm1893 = vweird.f32 %v1874
          %vm1894 = vweird.f32 %v1887
          %vm1895 = vmor %vm1893, %vm1894
          %v1896 = vsel %vm1895, %v1887, %v1892
          %v1897 = vrsqrt.pop %v1875
          %v1898 = vmul.f32 %v1897, %v1875
          %v1899 = vmul.f32 %v1898, %v1897
          %v1900 = vmul.f32 0.5, %v1899
          %v1901 = vsub.f32 1.5, %v1900
          %v1902 = vmul.f32 %v1897, %v1901
          %vm1903 = vweird.f32 %v1875
          %vm1904 = vweird.f32 %v1897
          %vm1905 = vmor %vm1903, %vm1904
          %v1906 = vsel %vm1905, %v1897, %v1902
          %v1907 = vrsqrt.pop %v1876
          %v1908 = vmul.f32 %v1907, %v1876
          %v1909 = vmul.f32 %v1908, %v1907
          %v1910 = vmul.f32 0.5, %v1909
          %v1911 = vsub.f32 1.5, %v1910
          %v1912 = vmul.f32 %v1907, %v1911
          %vm1913 = vweird.f32 %v1876
          %vm1914 = vweird.f32 %v1907
          %vm1915 = vmor %vm1913, %vm1914
          %v1916 = vsel %vm1915, %v1907, %v1912
          %v1917 = vmul.f32 %v1853, %v1886
          %v1918 = vmul.f32 %v1854, %v1896
          %v1919 = vmul.f32 %v1855, %v1906
          %v1920 = vmul.f32 %v1856, %v1916
          %v1921 = vperm.slane %v499, 4
          %v1922 = vmul.f32 %v1917, %v1921
          %v1923 = vmul.f32 %v1918, %v1921
          %v1924 = vmul.f32 %v1919, %v1921
          %v1925 = vmul.f32 %v1920, %v1921
          %v1926 = vperm.slane %v499, 5
          %v1927 = vadd.f32 %v1922, %v1926
          %v1928 = vadd.f32 %v1923, %v1926
          %v1929 = vadd.f32 %v1924, %v1926
          %v1930 = vadd.f32 %v1925, %v1926
        $region73: #{tpu_custom_call.1} parent=47 // loop_footer
          %s384 = sadd.s32 1, %s380
        $region74: #{tpu_custom_call.1} parent=47 // loop_footer_branch
          %379 = sbr.rel target = $region70
        $region75: #{tpu_custom_call.1} parent=47 // loop_exit
          _
        %1931 = vst [vmem:[%s365] sm:$0xff] %v385
        %1932 = vst [vmem:[%s365 + $0x8] sm:$0xff] %v386
        %1933 = vst [vmem:[%s365 + $0x10] sm:$0xff] %v387
        %1934 = vst [vmem:[%s365 + $0x18] sm:$0xff] %v388
        %s1935 = sand.u32 %s186, 1
        %s1936 = scalar_lea.sflag [#allocation5], %s1935
        %s1937 = sand.u32 %s186, 1
        %s1938 = smul.addr %s1937, 32
        %s1939 = scalar_lea.vmem [#allocation12], %s1938
        // Predicated region
        $region76: #{tpu_custom_call.1} parent=47 // pred_check
          %p1940 = pneg %p196
        $region77: #{tpu_custom_call.1} parent=47 // pred_check_branch
          %1942 = sbr.rel (%p1940) target = $region79
        $region78: #{tpu_custom_call.1} parent=47 // pred_region
          %s1943 = smul.u32 2, %s26
          %1945 = vsyncadd %s1936, 0
          %s1946 = smul.addr %s1943, 2
          %s1947 = smul.addr %s1946, 8
          %s1948 = scalar_lea.hbm %s7, %s1947
          %s1949 = sshll.u32 %s1939, 4
          %s1950 = int_to_ptr.vmem [resolvable:$true] %s1949
          %s1951 = sshll.u32 %s1948, 4
          %s1952 = int_to_ptr.hbm [resolvable:$true] %s1951
          %1957 = dma.vmem_to_hbm [thread:$0]  %s1950, 512, %s1952, %s1936, 128, 128, 8
        $region79: #{tpu_custom_call.1} parent=47 // pred_fallthru
          _
      $region48: #{tpu_custom_call.1} parent=5 // pred_fallthru
        _
      %p1958 = scmp.le.s32.totalorder 2, %s21
      // Predicated region
      $region80: #{tpu_custom_call.1} parent=5 // pred_check
        %p1959 = pneg %p1958
      $region81: #{tpu_custom_call.1} parent=5 // pred_check_branch
        %1961 = sbr.rel (%p1959) target = $region83
      $region82: #{tpu_custom_call.1} parent=5 // pred_region
        %s1962 = ssub.s32 %s21, 2
        // Predicated region
        $region84: #{tpu_custom_call.1} parent=82 // pred_check
          %p1963 = pneg %p202
        $region85: #{tpu_custom_call.1} parent=82 // pred_check_branch
          %1965 = sbr.rel (%p1963) target = $region87
        $region86: #{tpu_custom_call.1} parent=82 // pred_region
          %s1966 = sand.u32 %s187, 1
          %s1967 = scalar_lea.sflag [#allocation5], %s1966
          %s1968 = sand.u32 %s187, 1
          %s1969 = smul.addr %s1968, 32
          %s1970 = scalar_lea.vmem [#allocation12], %s1969
          %1972 = dma.done %s1967, 512
        $region87: #{tpu_custom_call.1} parent=82 // pred_fallthru
          _
      $region83: #{tpu_custom_call.1} parent=5 // pred_fallthru
        _
    $region6: #{tpu_custom_call.1} parent=1 // loop_footer
      %s25 = sadd.s32 1, %s21
    $region7: #{tpu_custom_call.1} parent=1 // loop_footer_branch
      %20 = sbr.rel target = $region3
    $region8: #{tpu_custom_call.1} parent=1 // loop_exit
      _
    %1973 = vsyncpa [#allocation4], 1
    %s1974 = scalar_lea.sflag [#allocation4], 1
    %1975 = vsyncpa %s1974, 1
    %1976 = vsyncpa [#allocation7], 1
    %1977 = vsyncpa [#allocation10], 1
    %1978 = vsyncpa [#allocation5], 1
    %s1979 = scalar_lea.sflag [#allocation5], 1
    %1980 = vsyncpa %s1979, 1

</llo_original>
